<compile_context>
chip_gen: v7x
topology: tpu7x:2x2x1
jax: 0.10.0
libtpu: 0.0.40
codegen_flags: <defaults>
</compile_context>

<pallas_src>
import math

import jax
import jax.numpy as jnp
import numpy as np
from jax import lax
from jax.experimental import pallas as pl
from jax.experimental.pallas import tpu as pltpu

# ---------------------------------------------------------------------------
# Problem sizes (small, consistent with the module's forward)
# ---------------------------------------------------------------------------
SEQ_LEN = 8      # len(netInput)
IN_DIM = 16      # inDim
HIDDEN = 32      # hiddenDim
OUT_DIM = 10     # outDim
LAYERS = 2       # hiddenLayers
OUT_PAD = 128    # pad h2o output row to a full 128-lane vreg
NEG_BIG = -1e30  # bias padding -> padded logits never affect log_softmax


# ---------------------------------------------------------------------------
# Pallas kernel
# ---------------------------------------------------------------------------
def lstm_logsoftmax_kernel(
    x_ref,        # (T, IN_DIM)
    wih0_ref,     # (IN_DIM, 4H)   layer 0 input->gates (transposed)
    b0_ref,       # (1, 4H)        layer 0 bias (b_ih + b_hh)
    wpk_ref,      # (L*H, L*4H)    packed recurrent + inter-layer weights
    br_ref,       # (L-1, 1, 4H)   biases of layers 1..L-1 (b_ih + b_hh)
    wout_ref,     # (H, OUT_PAD)   h2o weight (transposed, zero-padded cols)
    bout_ref,     # (1, OUT_PAD)   h2o bias (NEG_BIG-padded)
    out_ref,      # (T, OUT_PAD)   log_softmax output (padded)
):
    H = HIDDEN
    L = LAYERS
    T = x_ref.shape[0]

    # ----- hoisted one-time work (batched, off the serial chain) -----------
    gx0 = jnp.dot(x_ref[...], wih0_ref[...],
                  preferred_element_type=jnp.float32) + b0_ref[...]   # (T,4H)
    # split into per-timestep rows OUTSIDE the loop so the sublane extract is
    # never on the h/c critical chain
    gx0_rows = [gx0[t:t + 1, :] for t in range(T)]                    # (1,4H) each

    w_pk = wpk_ref[...]                                               # (L*H, L*4H)
    b_rest = [br_ref[l] for l in range(L - 1)]                        # (1,4H) each
    w_out = wout_ref[...]                                             # (H, OUT_PAD)
    b_out = bout_ref[...]                                             # (1, OUT_PAD)

    # hoisted lane-masked affine constants for the single-tanh activation:
    #   sigmoid(x) = 0.5*tanh(0.5*x) + 0.5 ; tanh(x) = 1.0*tanh(1.0*x) + 0.0
    lane = lax.broadcasted_iota(jnp.int32, (1, 4 * H), 1)
    is_g = (lane >= 2 * H) & (lane < 3 * H)
    scale = jnp.where(is_g, 1.0, 0.5).astype(jnp.float32)   # pre & post scale
    offset = jnp.where(is_g, 0.0, 0.5).astype(jnp.float32)  # post offset

    def cell(gates, c_prev):
        # One full-width EUP tanh covers both the sigmoid and tanh gates.
        acts = jnp.tanh(gates * scale) * scale + offset
        i = acts[:, 0 * H:1 * H]
        f = acts[:, 1 * H:2 * H]
        g = acts[:, 2 * H:3 * H]
        o = acts[:, 3 * H:4 * H]
        c_new = f * c_prev + i * g
        h_new = o * jnp.tanh(c_new)
        return h_new, c_new

    # ----- fused, software-pipelined recurrence -----------------------------
    # At iteration s, layer l computes its timestep (s - l).  The packed
    # matmul only needs state from BEFORE this iteration, so both layers'
    # cell updates inside one iteration are independent.
    h = [jnp.zeros((1, H), jnp.float32) for _ in range(L)]
    c = [jnp.zeros((1, H), jnp.float32) for _ in range(L)]

    for s in range(T + L - 1):               # fully unrolled (T=8, L=2 -> 9)
        # one (1, L*H) @ (L*H, L*4H) MXU op per iteration:
        #   lanes [l*4H:(l+1)*4H] = h_{l-1}(s-l) @ Wih_l^T + h_l(s-l-1) @ Whh_l^T
        lhs = jnp.concatenate(h, axis=1) if L > 1 else h[0]
        m = jnp.dot(lhs, w_pk, preferred_element_type=jnp.float32)   # (1,L*4H)

        new_h = list(h)
        new_c = list(c)
        for l in range(L):
            t_l = s - l
            if 0 <= t_l < T:                 # static Python condition
                gates = m[:, l * 4 * H:(l + 1) * 4 * H]
                if l == 0:
                    gates = gates + gx0_rows[t_l]
                else:
                    gates = gates + b_rest[l - 1]
                hn, cn = cell(gates, c[l])
                new_h[l], new_c[l] = hn, cn
                if l == L - 1:
                    # h2o + per-row log_softmax, entirely off the h/c chain;
                    # hides under the next iteration's recurrent matmul.
                    logit = jnp.dot(hn, w_out,
                                    preferred_element_type=jnp.float32) + b_out
                    mx = jnp.max(logit, axis=1, keepdims=True)
                    lse = jnp.log(jnp.sum(jnp.exp(logit - mx),
                                          axis=1, keepdims=True)) + mx
                    out_ref[pl.ds(t_l, 1), :] = logit - lse
        h, c = new_h, new_c


# ---------------------------------------------------------------------------
# Wrapper
# ---------------------------------------------------------------------------
def lstm_logsoftmax_forward(x, params):
    T = x.shape[0]
    vmem = pl.BlockSpec(memory_space=pltpu.MemorySpace.VMEM)
    out_pad = pl.pallas_call(
        lstm_logsoftmax_kernel,
        out_shape=jax.ShapeDtypeStruct((T, OUT_PAD), jnp.float32),
        in_specs=[vmem] * 7,
        out_specs=vmem,
    )(
        x,
        params["wih0_T"], params["b0"], params["w_packed"], params["b_rest"],
        params["wout_pad_T"], params["bout_pad"],
    )
    return out_pad[:, :OUT_DIM]


# ---------------------------------------------------------------------------
# Deterministic parameter init (PyTorch-style uniform(-1/sqrt(H), 1/sqrt(H)))
# ---------------------------------------------------------------------------
def init_raw_params(key):
    H = HIDDEN
    k = 1.0 / math.sqrt(H)

    def uni(key, shape):
        return jax.random.uniform(key, shape, jnp.float32, -k, k)

    keys = iter(jax.random.split(key, 4 * LAYERS + 2))

    wih_T, whh_T, b = [], [], []
    for l in range(LAYERS):
        in_sz = IN_DIM if l == 0 else H
        wih_T.append(uni(next(keys), (4 * H, in_sz)).T)        # (in, 4H)
        whh_T.append(uni(next(keys), (4 * H, H)).T)            # (H, 4H)
        b.append((uni(next(keys), (4 * H,)) +
                  uni(next(keys), (4 * H,)))[None, :])         # (1, 4H)

    wout_T = uni(next(keys), (OUT_DIM, H)).T                   # (H, OUT_DIM)
    bout = uni(next(keys), (OUT_DIM,))[None, :]                # (1, OUT_DIM)
    return {"wih_T": wih_T, "whh_T": whh_T, "b": b,
            "wout_T": wout_T, "bout": bout}


def pack_params(raw):
    """Build the packed / padded parameter layout the kernel expects."""
    H = HIDDEN
    L = LAYERS

    # block-structured recurrent + inter-layer weight:
    #   rows l*H:(l+1)*H, cols l*4H:(l+1)*4H      = Whh_l^T
    #   rows l*H:(l+1)*H, cols (l+1)*4H:(l+2)*4H  = Wih_{l+1}^T
    w_pk = jnp.zeros((L * H, L * 4 * H), jnp.float32)
    for l in range(L):
        w_pk = w_pk.at[l * H:(l + 1) * H,
                       l * 4 * H:(l + 1) * 4 * H].set(raw["whh_T"][l])
        if l + 1 < L:
            w_pk = w_pk.at[l * H:(l + 1) * H,
                           (l + 1) * 4 * H:(l + 2) * 4 * H].set(
                raw["wih_T"][l + 1])

    b_rest = jnp.stack(raw["b"][1:], axis=0)                   # (L-1, 1, 4H)

    wout_pad = jnp.zeros((H, OUT_PAD), jnp.float32)
    wout_pad = wout_pad.at[:, :OUT_DIM].set(raw["wout_T"])
    bout_pad = jnp.full((1, OUT_PAD), NEG_BIG, jnp.float32)
    bout_pad = bout_pad.at[:, :OUT_DIM].set(raw["bout"])

    return {
        "wih0_T": raw["wih_T"][0],     # (IN_DIM, 4H)
        "b0": raw["b"][0],             # (1, 4H)
        "w_packed": w_pk,              # (L*H, L*4H)
        "b_rest": b_rest,              # (L-1, 1, 4H)
        "wout_pad_T": wout_pad,        # (H, OUT_PAD)
        "bout_pad": bout_pad,          # (1, OUT_PAD)
    }


# ---------------------------------------------------------------------------
# Pure-JAX reference (for correctness check)
# ---------------------------------------------------------------------------
def ref_forward(x, raw):
    H = HIDDEN
    T = x.shape[0]

    def layer(inp, wih_T, whh_T, b):
        gx = inp @ wih_T + b
        h = jnp.zeros((1, H), jnp.float32)
        c = jnp.zeros((1, H), jnp.float32)
        outs = []
        for t in range(T):
            gates = gx[t:t + 1] + h @ whh_T
            i = jax.nn.sigmoid(gates[:, 0 * H:1 * H])
            f = jax.nn.sigmoid(gates[:, 1 * H:2 * H])
            g = jnp.tanh(gates[:, 2 * H:3 * H])
            o = jax.nn.sigmoid(gates[:, 3 * H:4 * H])
            c = f * c + i * g
            h = o * jnp.tanh(c)
            outs.append(h)
        return jnp.concatenate(outs, axis=0)

    cur = x
    for l in range(LAYERS):
        cur = layer(cur, raw["wih_T"][l], raw["whh_T"][l], raw["b"][l])
    logits = cur @ raw["wout_T"] + raw["bout"]
    return jax.nn.log_softmax(logits, axis=1)


# ---------------------------------------------------------------------------
if __name__ == "__main__":
    key = jax.random.PRNGKey(0)
    k_in, k_par = jax.random.split(key)

    net_input = jax.random.normal(k_in, (SEQ_LEN, IN_DIM), jnp.float32)
    raw = init_raw_params(k_par)
    params = pack_params(raw)

    out = jax.block_until_ready(lstm_logsoftmax_forward(net_input, params))
    ref = jax.block_until_ready(ref_forward(net_input, raw))

    if not np.allclose(np.asarray(out), np.asarray(ref), atol=2e-4, rtol=2e-4):
        raise AssertionError("Pallas kernel output does not match reference")

    print("KERNEL_OK")
</pallas_src>

<mosaic_0001>
module attributes {stable_mosaic.version = 11 : i64} {
  func.func @lstm_logsoftmax_kernel(%arg0: memref<8x16xf32, #tpu.memory_space<vmem>>, %arg1: memref<16x128xf32, #tpu.memory_space<vmem>>, %arg2: memref<1x128xf32, #tpu.memory_space<vmem>>, %arg3: memref<64x256xf32, #tpu.memory_space<vmem>>, %arg4: memref<1x1x128xf32, #tpu.memory_space<vmem>>, %arg5: memref<32x128xf32, #tpu.memory_space<vmem>>, %arg6: memref<1x128xf32, #tpu.memory_space<vmem>>, %arg7: memref<8x128xf32, #tpu.memory_space<vmem>>) attributes {dimension_semantics = [], scalar_prefetch = 0 : i64, scratch_operands = 0 : i64, tpu.core_type = #tpu.core_type<tc>} {
    %c0 = arith.constant 0 : index
    %c0_0 = arith.constant 0 : index
    %0 = vector.load %arg0[%c0, %c0_0] : memref<8x16xf32, #tpu.memory_space<vmem>>, vector<8x16xf32>
    %c0_1 = arith.constant 0 : index
    %c0_2 = arith.constant 0 : index
    %1 = vector.load %arg1[%c0_1, %c0_2] : memref<16x128xf32, #tpu.memory_space<vmem>>, vector<16x128xf32>
    %cst = arith.constant dense<0.000000e+00> : vector<8x128xf32>
    %2 = tpu.matmul %0, %1, %cst {dimension_numbers = #tpu.dot_dimension_numbers<[1], [0], [0], [1], [0, 0, 1, 1], [], []>} : vector<8x16xf32>, vector<16x128xf32>, vector<8x128xf32> -> vector<8x128xf32>
    %c0_3 = arith.constant 0 : index
    %c0_4 = arith.constant 0 : index
    %3 = vector.load %arg2[%c0_3, %c0_4] : memref<1x128xf32, #tpu.memory_space<vmem>>, vector<1x128xf32>
    %4 = vector.broadcast %3 : vector<1x128xf32> to vector<8x128xf32>
    %5 = arith.addf %2, %4 : vector<8x128xf32>
    %6 = vector.extract_strided_slice %5 {offsets = [0, 0], sizes = [1, 128], strides = [1, 1]} : vector<8x128xf32> to vector<1x128xf32>
    %7 = vector.extract_strided_slice %5 {offsets = [1, 0], sizes = [1, 128], strides = [1, 1]} : vector<8x128xf32> to vector<1x128xf32>
    %8 = vector.extract_strided_slice %5 {offsets = [2, 0], sizes = [1, 128], strides = [1, 1]} : vector<8x128xf32> to vector<1x128xf32>
    %9 = vector.extract_strided_slice %5 {offsets = [3, 0], sizes = [1, 128], strides = [1, 1]} : vector<8x128xf32> to vector<1x128xf32>
    %10 = vector.extract_strided_slice %5 {offsets = [4, 0], sizes = [1, 128], strides = [1, 1]} : vector<8x128xf32> to vector<1x128xf32>
    %11 = vector.extract_strided_slice %5 {offsets = [5, 0], sizes = [1, 128], strides = [1, 1]} : vector<8x128xf32> to vector<1x128xf32>
    %12 = vector.extract_strided_slice %5 {offsets = [6, 0], sizes = [1, 128], strides = [1, 1]} : vector<8x128xf32> to vector<1x128xf32>
    %13 = vector.extract_strided_slice %5 {offsets = [7, 0], sizes = [1, 128], strides = [1, 1]} : vector<8x128xf32> to vector<1x128xf32>
    %c0_5 = arith.constant 0 : index
    %c0_6 = arith.constant 0 : index
    %14 = vector.load %arg3[%c0_5, %c0_6] : memref<64x256xf32, #tpu.memory_space<vmem>>, vector<64x256xf32>
    %c0_7 = arith.constant 0 : index
    %c0_8 = arith.constant 0 : index
    %c0_9 = arith.constant 0 : index
    %15 = vector.load %arg4[%c0_7, %c0_8, %c0_9] : memref<1x1x128xf32, #tpu.memory_space<vmem>>, vector<1x1x128xf32>
    %16 = vector.shape_cast %15 : vector<1x1x128xf32> to vector<1x128xf32>
    %c0_10 = arith.constant 0 : index
    %c0_11 = arith.constant 0 : index
    %17 = vector.load %arg5[%c0_10, %c0_11] : memref<32x128xf32, #tpu.memory_space<vmem>>, vector<32x128xf32>
    %c0_12 = arith.constant 0 : index
    %c0_13 = arith.constant 0 : index
    %18 = vector.load %arg6[%c0_12, %c0_13] : memref<1x128xf32, #tpu.memory_space<vmem>>, vector<1x128xf32>
    %19 = tpu.iota {dimensions = array<i32: 1>} : vector<1x128xi32>
    %c64_i32 = arith.constant 64 : i32
    %20 = vector.broadcast %c64_i32 : i32 to vector<1x128xi32>
    %21 = arith.cmpi sge, %19, %20 : vector<1x128xi32>
    %c96_i32 = arith.constant 96 : i32
    %22 = vector.broadcast %c96_i32 : i32 to vector<1x128xi32>
    %23 = arith.cmpi slt, %19, %22 : vector<1x128xi32>
    %24 = arith.andi %21, %23 : vector<1x128xi1>
    %cst_14 = arith.constant 1.000000e+00 : f32
    %cst_15 = arith.constant 5.000000e-01 : f32
    %25 = vector.broadcast %cst_14 : f32 to vector<1x128xf32>
    %26 = vector.broadcast %cst_15 : f32 to vector<1x128xf32>
    %27 = arith.select %24, %25, %26 : vector<1x128xi1>, vector<1x128xf32>
    %cst_16 = arith.constant 0.000000e+00 : f32
    %cst_17 = arith.constant 5.000000e-01 : f32
    %28 = vector.broadcast %cst_16 : f32 to vector<1x128xf32>
    %29 = vector.broadcast %cst_17 : f32 to vector<1x128xf32>
    %30 = arith.select %24, %28, %29 : vector<1x128xi1>, vector<1x128xf32>
    %cst_18 = arith.constant 0.000000e+00 : f32
    %31 = vector.broadcast %cst_18 : f32 to vector<1x32xf32>
    %cst_19 = arith.constant 0.000000e+00 : f32
    %32 = vector.broadcast %cst_19 : f32 to vector<1x32xf32>
    %cst_20 = arith.constant 0.000000e+00 : f32
    %33 = vector.broadcast %cst_20 : f32 to vector<1x32xf32>
    %cst_21 = arith.constant 0.000000e+00 : f32
    %34 = vector.broadcast %cst_21 : f32 to vector<1x32xf32>
    %35 = tpu.concatenate %31, %32 in 1 : vector<1x32xf32>, vector<1x32xf32> -> vector<1x64xf32>
    %cst_22 = arith.constant dense<0.000000e+00> : vector<1x256xf32>
    %36 = tpu.matmul %35, %14, %cst_22 {dimension_numbers = #tpu.dot_dimension_numbers<[1], [0], [0], [1], [0, 0, 1, 1], [], []>} : vector<1x64xf32>, vector<64x256xf32>, vector<1x256xf32> -> vector<1x256xf32>
    %37 = vector.extract_strided_slice %36 {offsets = [0, 0], sizes = [1, 128], strides = [1, 1]} : vector<1x256xf32> to vector<1x128xf32>
    %38 = arith.addf %37, %6 : vector<1x128xf32>
    %39 = arith.mulf %38, %27 : vector<1x128xf32>
    %40 = math.tanh %39 : vector<1x128xf32>
    %41 = arith.mulf %40, %27 : vector<1x128xf32>
    %42 = arith.addf %41, %30 : vector<1x128xf32>
    %43 = vector.extract_strided_slice %42 {offsets = [0, 0], sizes = [1, 32], strides = [1, 1]} : vector<1x128xf32> to vector<1x32xf32>
    %44 = vector.extract_strided_slice %42 {offsets = [0, 32], sizes = [1, 32], strides = [1, 1]} : vector<1x128xf32> to vector<1x32xf32>
    %45 = vector.extract_strided_slice %42 {offsets = [0, 64], sizes = [1, 32], strides = [1, 1]} : vector<1x128xf32> to vector<1x32xf32>
    %46 = vector.extract_strided_slice %42 {offsets = [0, 96], sizes = [1, 32], strides = [1, 1]} : vector<1x128xf32> to vector<1x32xf32>
    %47 = arith.mulf %44, %33 : vector<1x32xf32>
    %48 = arith.mulf %43, %45 : vector<1x32xf32>
    %49 = arith.addf %47, %48 : vector<1x32xf32>
    %50 = math.tanh %49 : vector<1x32xf32>
    %51 = arith.mulf %46, %50 : vector<1x32xf32>
    %52 = tpu.concatenate %51, %32 in 1 : vector<1x32xf32>, vector<1x32xf32> -> vector<1x64xf32>
    %cst_23 = arith.constant dense<0.000000e+00> : vector<1x256xf32>
    %53 = tpu.matmul %52, %14, %cst_23 {dimension_numbers = #tpu.dot_dimension_numbers<[1], [0], [0], [1], [0, 0, 1, 1], [], []>} : vector<1x64xf32>, vector<64x256xf32>, vector<1x256xf32> -> vector<1x256xf32>
    %54 = vector.extract_strided_slice %53 {offsets = [0, 0], sizes = [1, 128], strides = [1, 1]} : vector<1x256xf32> to vector<1x128xf32>
    %55 = arith.addf %54, %7 : vector<1x128xf32>
    %56 = arith.mulf %55, %27 : vector<1x128xf32>
    %57 = math.tanh %56 : vector<1x128xf32>
    %58 = arith.mulf %57, %27 : vector<1x128xf32>
    %59 = arith.addf %58, %30 : vector<1x128xf32>
    %60 = vector.extract_strided_slice %59 {offsets = [0, 0], sizes = [1, 32], strides = [1, 1]} : vector<1x128xf32> to vector<1x32xf32>
    %61 = vector.extract_strided_slice %59 {offsets = [0, 32], sizes = [1, 32], strides = [1, 1]} : vector<1x128xf32> to vector<1x32xf32>
    %62 = vector.extract_strided_slice %59 {offsets = [0, 64], sizes = [1, 32], strides = [1, 1]} : vector<1x128xf32> to vector<1x32xf32>
    %63 = vector.extract_strided_slice %59 {offsets = [0, 96], sizes = [1, 32], strides = [1, 1]} : vector<1x128xf32> to vector<1x32xf32>
    %64 = arith.mulf %61, %49 : vector<1x32xf32>
    %65 = arith.mulf %60, %62 : vector<1x32xf32>
    %66 = arith.addf %64, %65 : vector<1x32xf32>
    %67 = math.tanh %66 : vector<1x32xf32>
    %68 = arith.mulf %63, %67 : vector<1x32xf32>
    %69 = vector.extract_strided_slice %53 {offsets = [0, 128], sizes = [1, 128], strides = [1, 1]} : vector<1x256xf32> to vector<1x128xf32>
    %70 = arith.addf %69, %16 : vector<1x128xf32>
    %71 = arith.mulf %70, %27 : vector<1x128xf32>
    %72 = math.tanh %71 : vector<1x128xf32>
    %73 = arith.mulf %72, %27 : vector<1x128xf32>
    %74 = arith.addf %73, %30 : vector<1x128xf32>
    %75 = vector.extract_strided_slice %74 {offsets = [0, 0], sizes = [1, 32], strides = [1, 1]} : vector<1x128xf32> to vector<1x32xf32>
    %76 = vector.extract_strided_slice %74 {offsets = [0, 32], sizes = [1, 32], strides = [1, 1]} : vector<1x128xf32> to vector<1x32xf32>
    %77 = vector.extract_strided_slice %74 {offsets = [0, 64], sizes = [1, 32], strides = [1, 1]} : vector<1x128xf32> to vector<1x32xf32>
    %78 = vector.extract_strided_slice %74 {offsets = [0, 96], sizes = [1, 32], strides = [1, 1]} : vector<1x128xf32> to vector<1x32xf32>
    %79 = arith.mulf %76, %34 : vector<1x32xf32>
    %80 = arith.mulf %75, %77 : vector<1x32xf32>
    %81 = arith.addf %79, %80 : vector<1x32xf32>
    %82 = math.tanh %81 : vector<1x32xf32>
    %83 = arith.mulf %78, %82 : vector<1x32xf32>
    %cst_24 = arith.constant dense<0.000000e+00> : vector<1x128xf32>
    %84 = tpu.matmul %83, %17, %cst_24 {dimension_numbers = #tpu.dot_dimension_numbers<[1], [0], [0], [1], [0, 0, 1, 1], [], []>} : vector<1x32xf32>, vector<32x128xf32>, vector<1x128xf32> -> vector<1x128xf32>
    %85 = arith.addf %84, %18 : vector<1x128xf32>
    %cst_25 = arith.constant dense<0xFF800000> : vector<1xf32>
    %86 = vector.multi_reduction <maximumf>, %85, %cst_25 [1] : vector<1x128xf32> to vector<1xf32>
    %87 = vector.shape_cast %86 : vector<1xf32> to vector<1x1xf32>
    %88 = vector.broadcast %87 : vector<1x1xf32> to vector<1x128xf32>
    %89 = arith.subf %85, %88 : vector<1x128xf32>
    %90 = math.exp %89 : vector<1x128xf32>
    %cst_26 = arith.constant dense<0.000000e+00> : vector<1xf32>
    %91 = vector.multi_reduction <add>, %90, %cst_26 [1] : vector<1x128xf32> to vector<1xf32>
    %92 = vector.shape_cast %91 : vector<1xf32> to vector<1x1xf32>
    %93 = math.log %92 : vector<1x1xf32>
    %94 = arith.addf %93, %87 : vector<1x1xf32>
    %95 = vector.broadcast %94 : vector<1x1xf32> to vector<1x128xf32>
    %96 = arith.subf %85, %95 : vector<1x128xf32>
    %c0_27 = arith.constant 0 : index
    %c0_28 = arith.constant 0 : index
    %97 = vector.load %arg7[%c0_27, %c0_28] : memref<8x128xf32, #tpu.memory_space<vmem>>, vector<1x128xf32>
    tpu.vector_store %arg7[%c0_27, %c0_28], %96 {strides = array<i32>} : memref<8x128xf32, #tpu.memory_space<vmem>>, vector<1x128xf32>,
    %98 = tpu.concatenate %68, %83 in 1 : vector<1x32xf32>, vector<1x32xf32> -> vector<1x64xf32>
    %cst_29 = arith.constant dense<0.000000e+00> : vector<1x256xf32>
    %99 = tpu.matmul %98, %14, %cst_29 {dimension_numbers = #tpu.dot_dimension_numbers<[1], [0], [0], [1], [0, 0, 1, 1], [], []>} : vector<1x64xf32>, vector<64x256xf32>, vector<1x256xf32> -> vector<1x256xf32>
    %100 = vector.extract_strided_slice %99 {offsets = [0, 0], sizes = [1, 128], strides = [1, 1]} : vector<1x256xf32> to vector<1x128xf32>
    %101 = arith.addf %100, %8 : vector<1x128xf32>
    %102 = arith.mulf %101, %27 : vector<1x128xf32>
    %103 = math.tanh %102 : vector<1x128xf32>
    %104 = arith.mulf %103, %27 : vector<1x128xf32>
    %105 = arith.addf %104, %30 : vector<1x128xf32>
    %106 = vector.extract_strided_slice %105 {offsets = [0, 0], sizes = [1, 32], strides = [1, 1]} : vector<1x128xf32> to vector<1x32xf32>
    %107 = vector.extract_strided_slice %105 {offsets = [0, 32], sizes = [1, 32], strides = [1, 1]} : vector<1x128xf32> to vector<1x32xf32>
    %108 = vector.extract_strided_slice %105 {offsets = [0, 64], sizes = [1, 32], strides = [1, 1]} : vector<1x128xf32> to vector<1x32xf32>
    %109 = vector.extract_strided_slice %105 {offsets = [0, 96], sizes = [1, 32], strides = [1, 1]} : vector<1x128xf32> to vector<1x32xf32>
    %110 = arith.mulf %107, %66 : vector<1x32xf32>
    %111 = arith.mulf %106, %108 : vector<1x32xf32>
    %112 = arith.addf %110, %111 : vector<1x32xf32>
    %113 = math.tanh %112 : vector<1x32xf32>
    %114 = arith.mulf %109, %113 : vector<1x32xf32>
    %115 = vector.extract_strided_slice %99 {offsets = [0, 128], sizes = [1, 128], strides = [1, 1]} : vector<1x256xf32> to vector<1x128xf32>
    %116 = arith.addf %115, %16 : vector<1x128xf32>
    %117 = arith.mulf %116, %27 : vector<1x128xf32>
    %118 = math.tanh %117 : vector<1x128xf32>
    %119 = arith.mulf %118, %27 : vector<1x128xf32>
    %120 = arith.addf %119, %30 : vector<1x128xf32>
    %121 = vector.extract_strided_slice %120 {offsets = [0, 0], sizes = [1, 32], strides = [1, 1]} : vector<1x128xf32> to vector<1x32xf32>
    %122 = vector.extract_strided_slice %120 {offsets = [0, 32], sizes = [1, 32], strides = [1, 1]} : vector<1x128xf32> to vector<1x32xf32>
    %123 = vector.extract_strided_slice %120 {offsets = [0, 64], sizes = [1, 32], strides = [1, 1]} : vector<1x128xf32> to vector<1x32xf32>
    %124 = vector.extract_strided_slice %120 {offsets = [0, 96], sizes = [1, 32], strides = [1, 1]} : vector<1x128xf32> to vector<1x32xf32>
    %125 = arith.mulf %122, %81 : vector<1x32xf32>
    %126 = arith.mulf %121, %123 : vector<1x32xf32>
    %127 = arith.addf %125, %126 : vector<1x32xf32>
    %128 = math.tanh %127 : vector<1x32xf32>
    %129 = arith.mulf %124, %128 : vector<1x32xf32>
    %cst_30 = arith.constant dense<0.000000e+00> : vector<1x128xf32>
    %130 = tpu.matmul %129, %17, %cst_30 {dimension_numbers = #tpu.dot_dimension_numbers<[1], [0], [0], [1], [0, 0, 1, 1], [], []>} : vector<1x32xf32>, vector<32x128xf32>, vector<1x128xf32> -> vector<1x128xf32>
    %131 = arith.addf %130, %18 : vector<1x128xf32>
    %cst_31 = arith.constant dense<0xFF800000> : vector<1xf32>
    %132 = vector.multi_reduction <maximumf>, %131, %cst_31 [1] : vector<1x128xf32> to vector<1xf32>
    %133 = vector.shape_cast %132 : vector<1xf32> to vector<1x1xf32>
    %134 = vector.broadcast %133 : vector<1x1xf32> to vector<1x128xf32>
    %135 = arith.subf %131, %134 : vector<1x128xf32>
    %136 = math.exp %135 : vector<1x128xf32>
    %cst_32 = arith.constant dense<0.000000e+00> : vector<1xf32>
    %137 = vector.multi_reduction <add>, %136, %cst_32 [1] : vector<1x128xf32> to vector<1xf32>
    %138 = vector.shape_cast %137 : vector<1xf32> to vector<1x1xf32>
    %139 = math.log %138 : vector<1x1xf32>
    %140 = arith.addf %139, %133 : vector<1x1xf32>
    %141 = vector.broadcast %140 : vector<1x1xf32> to vector<1x128xf32>
    %142 = arith.subf %131, %141 : vector<1x128xf32>
    %c1 = arith.constant 1 : index
    %c0_33 = arith.constant 0 : index
    %143 = vector.load %arg7[%c1, %c0_33] : memref<8x128xf32, #tpu.memory_space<vmem>>, vector<1x128xf32>
    tpu.vector_store %arg7[%c1, %c0_33], %142 {strides = array<i32>} : memref<8x128xf32, #tpu.memory_space<vmem>>, vector<1x128xf32>,
    %144 = tpu.concatenate %114, %129 in 1 : vector<1x32xf32>, vector<1x32xf32> -> vector<1x64xf32>
    %cst_34 = arith.constant dense<0.000000e+00> : vector<1x256xf32>
    %145 = tpu.matmul %144, %14, %cst_34 {dimension_numbers = #tpu.dot_dimension_numbers<[1], [0], [0], [1], [0, 0, 1, 1], [], []>} : vector<1x64xf32>, vector<64x256xf32>, vector<1x256xf32> -> vector<1x256xf32>
    %146 = vector.extract_strided_slice %145 {offsets = [0, 0], sizes = [1, 128], strides = [1, 1]} : vector<1x256xf32> to vector<1x128xf32>
    %147 = arith.addf %146, %9 : vector<1x128xf32>
    %148 = arith.mulf %147, %27 : vector<1x128xf32>
    %149 = math.tanh %148 : vector<1x128xf32>
    %150 = arith.mulf %149, %27 : vector<1x128xf32>
    %151 = arith.addf %150, %30 : vector<1x128xf32>
    %152 = vector.extract_strided_slice %151 {offsets = [0, 0], sizes = [1, 32], strides = [1, 1]} : vector<1x128xf32> to vector<1x32xf32>
    %153 = vector.extract_strided_slice %151 {offsets = [0, 32], sizes = [1, 32], strides = [1, 1]} : vector<1x128xf32> to vector<1x32xf32>
    %154 = vector.extract_strided_slice %151 {offsets = [0, 64], sizes = [1, 32], strides = [1, 1]} : vector<1x128xf32> to vector<1x32xf32>
    %155 = vector.extract_strided_slice %151 {offsets = [0, 96], sizes = [1, 32], strides = [1, 1]} : vector<1x128xf32> to vector<1x32xf32>
    %156 = arith.mulf %153, %112 : vector<1x32xf32>
    %157 = arith.mulf %152, %154 : vector<1x32xf32>
    %158 = arith.addf %156, %157 : vector<1x32xf32>
    %159 = math.tanh %158 : vector<1x32xf32>
    %160 = arith.mulf %155, %159 : vector<1x32xf32>
    %161 = vector.extract_strided_slice %145 {offsets = [0, 128], sizes = [1, 128], strides = [1, 1]} : vector<1x256xf32> to vector<1x128xf32>
    %162 = arith.addf %161, %16 : vector<1x128xf32>
    %163 = arith.mulf %162, %27 : vector<1x128xf32>
    %164 = math.tanh %163 : vector<1x128xf32>
    %165 = arith.mulf %164, %27 : vector<1x128xf32>
    %166 = arith.addf %165, %30 : vector<1x128xf32>
    %167 = vector.extract_strided_slice %166 {offsets = [0, 0], sizes = [1, 32], strides = [1, 1]} : vector<1x128xf32> to vector<1x32xf32>
    %168 = vector.extract_strided_slice %166 {offsets = [0, 32], sizes = [1, 32], strides = [1, 1]} : vector<1x128xf32> to vector<1x32xf32>
    %169 = vector.extract_strided_slice %166 {offsets = [0, 64], sizes = [1, 32], strides = [1, 1]} : vector<1x128xf32> to vector<1x32xf32>
    %170 = vector.extract_strided_slice %166 {offsets = [0, 96], sizes = [1, 32], strides = [1, 1]} : vector<1x128xf32> to vector<1x32xf32>
    %171 = arith.mulf %168, %127 : vector<1x32xf32>
    %172 = arith.mulf %167, %169 : vector<1x32xf32>
    %173 = arith.addf %171, %172 : vector<1x32xf32>
    %174 = math.tanh %173 : vector<1x32xf32>
    %175 = arith.mulf %170, %174 : vector<1x32xf32>
    %cst_35 = arith.constant dense<0.000000e+00> : vector<1x128xf32>
    %176 = tpu.matmul %175, %17, %cst_35 {dimension_numbers = #tpu.dot_dimension_numbers<[1], [0], [0], [1], [0, 0, 1, 1], [], []>} : vector<1x32xf32>, vector<32x128xf32>, vector<1x128xf32> -> vector<1x128xf32>
    %177 = arith.addf %176, %18 : vector<1x128xf32>
    %cst_36 = arith.constant dense<0xFF800000> : vector<1xf32>
    %178 = vector.multi_reduction <maximumf>, %177, %cst_36 [1] : vector<1x128xf32> to vector<1xf32>
    %179 = vector.shape_cast %178 : vector<1xf32> to vector<1x1xf32>
    %180 = vector.broadcast %179 : vector<1x1xf32> to vector<1x128xf32>
    %181 = arith.subf %177, %180 : vector<1x128xf32>
    %182 = math.exp %181 : vector<1x128xf32>
    %cst_37 = arith.constant dense<0.000000e+00> : vector<1xf32>
    %183 = vector.multi_reduction <add>, %182, %cst_37 [1] : vector<1x128xf32> to vector<1xf32>
    %184 = vector.shape_cast %183 : vector<1xf32> to vector<1x1xf32>
    %185 = math.log %184 : vector<1x1xf32>
    %186 = arith.addf %185, %179 : vector<1x1xf32>
    %187 = vector.broadcast %186 : vector<1x1xf32> to vector<1x128xf32>
    %188 = arith.subf %177, %187 : vector<1x128xf32>
    %c2 = arith.constant 2 : index
    %c0_38 = arith.constant 0 : index
    %189 = vector.load %arg7[%c2, %c0_38] : memref<8x128xf32, #tpu.memory_space<vmem>>, vector<1x128xf32>
    tpu.vector_store %arg7[%c2, %c0_38], %188 {strides = array<i32>} : memref<8x128xf32, #tpu.memory_space<vmem>>, vector<1x128xf32>,
    %190 = tpu.concatenate %160, %175 in 1 : vector<1x32xf32>, vector<1x32xf32> -> vector<1x64xf32>
    %cst_39 = arith.constant dense<0.000000e+00> : vector<1x256xf32>
    %191 = tpu.matmul %190, %14, %cst_39 {dimension_numbers = #tpu.dot_dimension_numbers<[1], [0], [0], [1], [0, 0, 1, 1], [], []>} : vector<1x64xf32>, vector<64x256xf32>, vector<1x256xf32> -> vector<1x256xf32>
    %192 = vector.extract_strided_slice %191 {offsets = [0, 0], sizes = [1, 128], strides = [1, 1]} : vector<1x256xf32> to vector<1x128xf32>
    %193 = arith.addf %192, %10 : vector<1x128xf32>
    %194 = arith.mulf %193, %27 : vector<1x128xf32>
    %195 = math.tanh %194 : vector<1x128xf32>
    %196 = arith.mulf %195, %27 : vector<1x128xf32>
    %197 = arith.addf %196, %30 : vector<1x128xf32>
    %198 = vector.extract_strided_slice %197 {offsets = [0, 0], sizes = [1, 32], strides = [1, 1]} : vector<1x128xf32> to vector<1x32xf32>
    %199 = vector.extract_strided_slice %197 {offsets = [0, 32], sizes = [1, 32], strides = [1, 1]} : vector<1x128xf32> to vector<1x32xf32>
    %200 = vector.extract_strided_slice %197 {offsets = [0, 64], sizes = [1, 32], strides = [1, 1]} : vector<1x128xf32> to vector<1x32xf32>
    %201 = vector.extract_strided_slice %197 {offsets = [0, 96], sizes = [1, 32], strides = [1, 1]} : vector<1x128xf32> to vector<1x32xf32>
    %202 = arith.mulf %199, %158 : vector<1x32xf32>
    %203 = arith.mulf %198, %200 : vector<1x32xf32>
    %204 = arith.addf %202, %203 : vector<1x32xf32>
    %205 = math.tanh %204 : vector<1x32xf32>
    %206 = arith.mulf %201, %205 : vector<1x32xf32>
    %207 = vector.extract_strided_slice %191 {offsets = [0, 128], sizes = [1, 128], strides = [1, 1]} : vector<1x256xf32> to vector<1x128xf32>
    %208 = arith.addf %207, %16 : vector<1x128xf32>
    %209 = arith.mulf %208, %27 : vector<1x128xf32>
    %210 = math.tanh %209 : vector<1x128xf32>
    %211 = arith.mulf %210, %27 : vector<1x128xf32>
    %212 = arith.addf %211, %30 : vector<1x128xf32>
    %213 = vector.extract_strided_slice %212 {offsets = [0, 0], sizes = [1, 32], strides = [1, 1]} : vector<1x128xf32> to vector<1x32xf32>
    %214 = vector.extract_strided_slice %212 {offsets = [0, 32], sizes = [1, 32], strides = [1, 1]} : vector<1x128xf32> to vector<1x32xf32>
    %215 = vector.extract_strided_slice %212 {offsets = [0, 64], sizes = [1, 32], strides = [1, 1]} : vector<1x128xf32> to vector<1x32xf32>
    %216 = vector.extract_strided_slice %212 {offsets = [0, 96], sizes = [1, 32], strides = [1, 1]} : vector<1x128xf32> to vector<1x32xf32>
    %217 = arith.mulf %214, %173 : vector<1x32xf32>
    %218 = arith.mulf %213, %215 : vector<1x32xf32>
    %219 = arith.addf %217, %218 : vector<1x32xf32>
    %220 = math.tanh %219 : vector<1x32xf32>
    %221 = arith.mulf %216, %220 : vector<1x32xf32>
    %cst_40 = arith.constant dense<0.000000e+00> : vector<1x128xf32>
    %222 = tpu.matmul %221, %17, %cst_40 {dimension_numbers = #tpu.dot_dimension_numbers<[1], [0], [0], [1], [0, 0, 1, 1], [], []>} : vector<1x32xf32>, vector<32x128xf32>, vector<1x128xf32> -> vector<1x128xf32>
    %223 = arith.addf %222, %18 : vector<1x128xf32>
    %cst_41 = arith.constant dense<0xFF800000> : vector<1xf32>
    %224 = vector.multi_reduction <maximumf>, %223, %cst_41 [1] : vector<1x128xf32> to vector<1xf32>
    %225 = vector.shape_cast %224 : vector<1xf32> to vector<1x1xf32>
    %226 = vector.broadcast %225 : vector<1x1xf32> to vector<1x128xf32>
    %227 = arith.subf %223, %226 : vector<1x128xf32>
    %228 = math.exp %227 : vector<1x128xf32>
    %cst_42 = arith.constant dense<0.000000e+00> : vector<1xf32>
    %229 = vector.multi_reduction <add>, %228, %cst_42 [1] : vector<1x128xf32> to vector<1xf32>
    %230 = vector.shape_cast %229 : vector<1xf32> to vector<1x1xf32>
    %231 = math.log %230 : vector<1x1xf32>
    %232 = arith.addf %231, %225 : vector<1x1xf32>
    %233 = vector.broadcast %232 : vector<1x1xf32> to vector<1x128xf32>
    %234 = arith.subf %223, %233 : vector<1x128xf32>
    %c3 = arith.constant 3 : index
    %c0_43 = arith.constant 0 : index
    %235 = vector.load %arg7[%c3, %c0_43] : memref<8x128xf32, #tpu.memory_space<vmem>>, vector<1x128xf32>
    tpu.vector_store %arg7[%c3, %c0_43], %234 {strides = array<i32>} : memref<8x128xf32, #tpu.memory_space<vmem>>, vector<1x128xf32>,
    %236 = tpu.concatenate %206, %221 in 1 : vector<1x32xf32>, vector<1x32xf32> -> vector<1x64xf32>
    %cst_44 = arith.constant dense<0.000000e+00> : vector<1x256xf32>
    %237 = tpu.matmul %236, %14, %cst_44 {dimension_numbers = #tpu.dot_dimension_numbers<[1], [0], [0], [1], [0, 0, 1, 1], [], []>} : vector<1x64xf32>, vector<64x256xf32>, vector<1x256xf32> -> vector<1x256xf32>
    %238 = vector.extract_strided_slice %237 {offsets = [0, 0], sizes = [1, 128], strides = [1, 1]} : vector<1x256xf32> to vector<1x128xf32>
    %239 = arith.addf %238, %11 : vector<1x128xf32>
    %240 = arith.mulf %239, %27 : vector<1x128xf32>
    %241 = math.tanh %240 : vector<1x128xf32>
    %242 = arith.mulf %241, %27 : vector<1x128xf32>
    %243 = arith.addf %242, %30 : vector<1x128xf32>
    %244 = vector.extract_strided_slice %243 {offsets = [0, 0], sizes = [1, 32], strides = [1, 1]} : vector<1x128xf32> to vector<1x32xf32>
    %245 = vector.extract_strided_slice %243 {offsets = [0, 32], sizes = [1, 32], strides = [1, 1]} : vector<1x128xf32> to vector<1x32xf32>
    %246 = vector.extract_strided_slice %243 {offsets = [0, 64], sizes = [1, 32], strides = [1, 1]} : vector<1x128xf32> to vector<1x32xf32>
    %247 = vector.extract_strided_slice %243 {offsets = [0, 96], sizes = [1, 32], strides = [1, 1]} : vector<1x128xf32> to vector<1x32xf32>
    %248 = arith.mulf %245, %204 : vector<1x32xf32>
    %249 = arith.mulf %244, %246 : vector<1x32xf32>
    %250 = arith.addf %248, %249 : vector<1x32xf32>
    %251 = math.tanh %250 : vector<1x32xf32>
    %252 = arith.mulf %247, %251 : vector<1x32xf32>
    %253 = vector.extract_strided_slice %237 {offsets = [0, 128], sizes = [1, 128], strides = [1, 1]} : vector<1x256xf32> to vector<1x128xf32>
    %254 = arith.addf %253, %16 : vector<1x128xf32>
    %255 = arith.mulf %254, %27 : vector<1x128xf32>
    %256 = math.tanh %255 : vector<1x128xf32>
    %257 = arith.mulf %256, %27 : vector<1x128xf32>
    %258 = arith.addf %257, %30 : vector<1x128xf32>
    %259 = vector.extract_strided_slice %258 {offsets = [0, 0], sizes = [1, 32], strides = [1, 1]} : vector<1x128xf32> to vector<1x32xf32>
    %260 = vector.extract_strided_slice %258 {offsets = [0, 32], sizes = [1, 32], strides = [1, 1]} : vector<1x128xf32> to vector<1x32xf32>
    %261 = vector.extract_strided_slice %258 {offsets = [0, 64], sizes = [1, 32], strides = [1, 1]} : vector<1x128xf32> to vector<1x32xf32>
    %262 = vector.extract_strided_slice %258 {offsets = [0, 96], sizes = [1, 32], strides = [1, 1]} : vector<1x128xf32> to vector<1x32xf32>
    %263 = arith.mulf %260, %219 : vector<1x32xf32>
    %264 = arith.mulf %259, %261 : vector<1x32xf32>
    %265 = arith.addf %263, %264 : vector<1x32xf32>
    %266 = math.tanh %265 : vector<1x32xf32>
    %267 = arith.mulf %262, %266 : vector<1x32xf32>
    %cst_45 = arith.constant dense<0.000000e+00> : vector<1x128xf32>
    %268 = tpu.matmul %267, %17, %cst_45 {dimension_numbers = #tpu.dot_dimension_numbers<[1], [0], [0], [1], [0, 0, 1, 1], [], []>} : vector<1x32xf32>, vector<32x128xf32>, vector<1x128xf32> -> vector<1x128xf32>
    %269 = arith.addf %268, %18 : vector<1x128xf32>
    %cst_46 = arith.constant dense<0xFF800000> : vector<1xf32>
    %270 = vector.multi_reduction <maximumf>, %269, %cst_46 [1] : vector<1x128xf32> to vector<1xf32>
    %271 = vector.shape_cast %270 : vector<1xf32> to vector<1x1xf32>
    %272 = vector.broadcast %271 : vector<1x1xf32> to vector<1x128xf32>
    %273 = arith.subf %269, %272 : vector<1x128xf32>
    %274 = math.exp %273 : vector<1x128xf32>
    %cst_47 = arith.constant dense<0.000000e+00> : vector<1xf32>
    %275 = vector.multi_reduction <add>, %274, %cst_47 [1] : vector<1x128xf32> to vector<1xf32>
    %276 = vector.shape_cast %275 : vector<1xf32> to vector<1x1xf32>
    %277 = math.log %276 : vector<1x1xf32>
    %278 = arith.addf %277, %271 : vector<1x1xf32>
    %279 = vector.broadcast %278 : vector<1x1xf32> to vector<1x128xf32>
    %280 = arith.subf %269, %279 : vector<1x128xf32>
    %c4 = arith.constant 4 : index
    %c0_48 = arith.constant 0 : index
    %281 = vector.load %arg7[%c4, %c0_48] : memref<8x128xf32, #tpu.memory_space<vmem>>, vector<1x128xf32>
    tpu.vector_store %arg7[%c4, %c0_48], %280 {strides = array<i32>} : memref<8x128xf32, #tpu.memory_space<vmem>>, vector<1x128xf32>,
    %282 = tpu.concatenate %252, %267 in 1 : vector<1x32xf32>, vector<1x32xf32> -> vector<1x64xf32>
    %cst_49 = arith.constant dense<0.000000e+00> : vector<1x256xf32>
    %283 = tpu.matmul %282, %14, %cst_49 {dimension_numbers = #tpu.dot_dimension_numbers<[1], [0], [0], [1], [0, 0, 1, 1], [], []>} : vector<1x64xf32>, vector<64x256xf32>, vector<1x256xf32> -> vector<1x256xf32>
    %284 = vector.extract_strided_slice %283 {offsets = [0, 0], sizes = [1, 128], strides = [1, 1]} : vector<1x256xf32> to vector<1x128xf32>
    %285 = arith.addf %284, %12 : vector<1x128xf32>
    %286 = arith.mulf %285, %27 : vector<1x128xf32>
    %287 = math.tanh %286 : vector<1x128xf32>
    %288 = arith.mulf %287, %27 : vector<1x128xf32>
    %289 = arith.addf %288, %30 : vector<1x128xf32>
    %290 = vector.extract_strided_slice %289 {offsets = [0, 0], sizes = [1, 32], strides = [1, 1]} : vector<1x128xf32> to vector<1x32xf32>
    %291 = vector.extract_strided_slice %289 {offsets = [0, 32], sizes = [1, 32], strides = [1, 1]} : vector<1x128xf32> to vector<1x32xf32>
    %292 = vector.extract_strided_slice %289 {offsets = [0, 64], sizes = [1, 32], strides = [1, 1]} : vector<1x128xf32> to vector<1x32xf32>
    %293 = vector.extract_strided_slice %289 {offsets = [0, 96], sizes = [1, 32], strides = [1, 1]} : vector<1x128xf32> to vector<1x32xf32>
    %294 = arith.mulf %291, %250 : vector<1x32xf32>
    %295 = arith.mulf %290, %292 : vector<1x32xf32>
    %296 = arith.addf %294, %295 : vector<1x32xf32>
    %297 = math.tanh %296 : vector<1x32xf32>
    %298 = arith.mulf %293, %297 : vector<1x32xf32>
    %299 = vector.extract_strided_slice %283 {offsets = [0, 128], sizes = [1, 128], strides = [1, 1]} : vector<1x256xf32> to vector<1x128xf32>
    %300 = arith.addf %299, %16 : vector<1x128xf32>
    %301 = arith.mulf %300, %27 : vector<1x128xf32>
    %302 = math.tanh %301 : vector<1x128xf32>
    %303 = arith.mulf %302, %27 : vector<1x128xf32>
    %304 = arith.addf %303, %30 : vector<1x128xf32>
    %305 = vector.extract_strided_slice %304 {offsets = [0, 0], sizes = [1, 32], strides = [1, 1]} : vector<1x128xf32> to vector<1x32xf32>
    %306 = vector.extract_strided_slice %304 {offsets = [0, 32], sizes = [1, 32], strides = [1, 1]} : vector<1x128xf32> to vector<1x32xf32>
    %307 = vector.extract_strided_slice %304 {offsets = [0, 64], sizes = [1, 32], strides = [1, 1]} : vector<1x128xf32> to vector<1x32xf32>
    %308 = vector.extract_strided_slice %304 {offsets = [0, 96], sizes = [1, 32], strides = [1, 1]} : vector<1x128xf32> to vector<1x32xf32>
    %309 = arith.mulf %306, %265 : vector<1x32xf32>
    %310 = arith.mulf %305, %307 : vector<1x32xf32>
    %311 = arith.addf %309, %310 : vector<1x32xf32>
    %312 = math.tanh %311 : vector<1x32xf32>
    %313 = arith.mulf %308, %312 : vector<1x32xf32>
    %cst_50 = arith.constant dense<0.000000e+00> : vector<1x128xf32>
    %314 = tpu.matmul %313, %17, %cst_50 {dimension_numbers = #tpu.dot_dimension_numbers<[1], [0], [0], [1], [0, 0, 1, 1], [], []>} : vector<1x32xf32>, vector<32x128xf32>, vector<1x128xf32> -> vector<1x128xf32>
    %315 = arith.addf %314, %18 : vector<1x128xf32>
    %cst_51 = arith.constant dense<0xFF800000> : vector<1xf32>
    %316 = vector.multi_reduction <maximumf>, %315, %cst_51 [1] : vector<1x128xf32> to vector<1xf32>
    %317 = vector.shape_cast %316 : vector<1xf32> to vector<1x1xf32>
    %318 = vector.broadcast %317 : vector<1x1xf32> to vector<1x128xf32>
    %319 = arith.subf %315, %318 : vector<1x128xf32>
    %320 = math.exp %319 : vector<1x128xf32>
    %cst_52 = arith.constant dense<0.000000e+00> : vector<1xf32>
    %321 = vector.multi_reduction <add>, %320, %cst_52 [1] : vector<1x128xf32> to vector<1xf32>
    %322 = vector.shape_cast %321 : vector<1xf32> to vector<1x1xf32>
    %323 = math.log %322 : vector<1x1xf32>
    %324 = arith.addf %323, %317 : vector<1x1xf32>
    %325 = vector.broadcast %324 : vector<1x1xf32> to vector<1x128xf32>
    %326 = arith.subf %315, %325 : vector<1x128xf32>
    %c5 = arith.constant 5 : index
    %c0_53 = arith.constant 0 : index
    %327 = vector.load %arg7[%c5, %c0_53] : memref<8x128xf32, #tpu.memory_space<vmem>>, vector<1x128xf32>
    tpu.vector_store %arg7[%c5, %c0_53], %326 {strides = array<i32>} : memref<8x128xf32, #tpu.memory_space<vmem>>, vector<1x128xf32>,
    %328 = tpu.concatenate %298, %313 in 1 : vector<1x32xf32>, vector<1x32xf32> -> vector<1x64xf32>
    %cst_54 = arith.constant dense<0.000000e+00> : vector<1x256xf32>
    %329 = tpu.matmul %328, %14, %cst_54 {dimension_numbers = #tpu.dot_dimension_numbers<[1], [0], [0], [1], [0, 0, 1, 1], [], []>} : vector<1x64xf32>, vector<64x256xf32>, vector<1x256xf32> -> vector<1x256xf32>
    %330 = vector.extract_strided_slice %329 {offsets = [0, 0], sizes = [1, 128], strides = [1, 1]} : vector<1x256xf32> to vector<1x128xf32>
    %331 = arith.addf %330, %13 : vector<1x128xf32>
    %332 = arith.mulf %331, %27 : vector<1x128xf32>
    %333 = math.tanh %332 : vector<1x128xf32>
    %334 = arith.mulf %333, %27 : vector<1x128xf32>
    %335 = arith.addf %334, %30 : vector<1x128xf32>
    %336 = vector.extract_strided_slice %335 {offsets = [0, 0], sizes = [1, 32], strides = [1, 1]} : vector<1x128xf32> to vector<1x32xf32>
    %337 = vector.extract_strided_slice %335 {offsets = [0, 32], sizes = [1, 32], strides = [1, 1]} : vector<1x128xf32> to vector<1x32xf32>
    %338 = vector.extract_strided_slice %335 {offsets = [0, 64], sizes = [1, 32], strides = [1, 1]} : vector<1x128xf32> to vector<1x32xf32>
    %339 = vector.extract_strided_slice %335 {offsets = [0, 96], sizes = [1, 32], strides = [1, 1]} : vector<1x128xf32> to vector<1x32xf32>
    %340 = arith.mulf %337, %296 : vector<1x32xf32>
    %341 = arith.mulf %336, %338 : vector<1x32xf32>
    %342 = arith.addf %340, %341 : vector<1x32xf32>
    %343 = math.tanh %342 : vector<1x32xf32>
    %344 = arith.mulf %339, %343 : vector<1x32xf32>
    %345 = vector.extract_strided_slice %329 {offsets = [0, 128], sizes = [1, 128], strides = [1, 1]} : vector<1x256xf32> to vector<1x128xf32>
    %346 = arith.addf %345, %16 : vector<1x128xf32>
    %347 = arith.mulf %346, %27 : vector<1x128xf32>
    %348 = math.tanh %347 : vector<1x128xf32>
    %349 = arith.mulf %348, %27 : vector<1x128xf32>
    %350 = arith.addf %349, %30 : vector<1x128xf32>
    %351 = vector.extract_strided_slice %350 {offsets = [0, 0], sizes = [1, 32], strides = [1, 1]} : vector<1x128xf32> to vector<1x32xf32>
    %352 = vector.extract_strided_slice %350 {offsets = [0, 32], sizes = [1, 32], strides = [1, 1]} : vector<1x128xf32> to vector<1x32xf32>
    %353 = vector.extract_strided_slice %350 {offsets = [0, 64], sizes = [1, 32], strides = [1, 1]} : vector<1x128xf32> to vector<1x32xf32>
    %354 = vector.extract_strided_slice %350 {offsets = [0, 96], sizes = [1, 32], strides = [1, 1]} : vector<1x128xf32> to vector<1x32xf32>
    %355 = arith.mulf %352, %311 : vector<1x32xf32>
    %356 = arith.mulf %351, %353 : vector<1x32xf32>
    %357 = arith.addf %355, %356 : vector<1x32xf32>
    %358 = math.tanh %357 : vector<1x32xf32>
    %359 = arith.mulf %354, %358 : vector<1x32xf32>
    %cst_55 = arith.constant dense<0.000000e+00> : vector<1x128xf32>
    %360 = tpu.matmul %359, %17, %cst_55 {dimension_numbers = #tpu.dot_dimension_numbers<[1], [0], [0], [1], [0, 0, 1, 1], [], []>} : vector<1x32xf32>, vector<32x128xf32>, vector<1x128xf32> -> vector<1x128xf32>
    %361 = arith.addf %360, %18 : vector<1x128xf32>
    %cst_56 = arith.constant dense<0xFF800000> : vector<1xf32>
    %362 = vector.multi_reduction <maximumf>, %361, %cst_56 [1] : vector<1x128xf32> to vector<1xf32>
    %363 = vector.shape_cast %362 : vector<1xf32> to vector<1x1xf32>
    %364 = vector.broadcast %363 : vector<1x1xf32> to vector<1x128xf32>
    %365 = arith.subf %361, %364 : vector<1x128xf32>
    %366 = math.exp %365 : vector<1x128xf32>
    %cst_57 = arith.constant dense<0.000000e+00> : vector<1xf32>
    %367 = vector.multi_reduction <add>, %366, %cst_57 [1] : vector<1x128xf32> to vector<1xf32>
    %368 = vector.shape_cast %367 : vector<1xf32> to vector<1x1xf32>
    %369 = math.log %368 : vector<1x1xf32>
    %370 = arith.addf %369, %363 : vector<1x1xf32>
    %371 = vector.broadcast %370 : vector<1x1xf32> to vector<1x128xf32>
    %372 = arith.subf %361, %371 : vector<1x128xf32>
    %c6 = arith.constant 6 : index
    %c0_58 = arith.constant 0 : index
    %373 = vector.load %arg7[%c6, %c0_58] : memref<8x128xf32, #tpu.memory_space<vmem>>, vector<1x128xf32>
    tpu.vector_store %arg7[%c6, %c0_58], %372 {strides = array<i32>} : memref<8x128xf32, #tpu.memory_space<vmem>>, vector<1x128xf32>,
    %374 = tpu.concatenate %344, %359 in 1 : vector<1x32xf32>, vector<1x32xf32> -> vector<1x64xf32>
    %cst_59 = arith.constant dense<0.000000e+00> : vector<1x256xf32>
    %375 = tpu.matmul %374, %14, %cst_59 {dimension_numbers = #tpu.dot_dimension_numbers<[1], [0], [0], [1], [0, 0, 1, 1], [], []>} : vector<1x64xf32>, vector<64x256xf32>, vector<1x256xf32> -> vector<1x256xf32>
    %376 = vector.extract_strided_slice %375 {offsets = [0, 128], sizes = [1, 128], strides = [1, 1]} : vector<1x256xf32> to vector<1x128xf32>
    %377 = arith.addf %376, %16 : vector<1x128xf32>
    %378 = arith.mulf %377, %27 : vector<1x128xf32>
    %379 = math.tanh %378 : vector<1x128xf32>
    %380 = arith.mulf %379, %27 : vector<1x128xf32>
    %381 = arith.addf %380, %30 : vector<1x128xf32>
    %382 = vector.extract_strided_slice %381 {offsets = [0, 0], sizes = [1, 32], strides = [1, 1]} : vector<1x128xf32> to vector<1x32xf32>
    %383 = vector.extract_strided_slice %381 {offsets = [0, 32], sizes = [1, 32], strides = [1, 1]} : vector<1x128xf32> to vector<1x32xf32>
    %384 = vector.extract_strided_slice %381 {offsets = [0, 64], sizes = [1, 32], strides = [1, 1]} : vector<1x128xf32> to vector<1x32xf32>
    %385 = vector.extract_strided_slice %381 {offsets = [0, 96], sizes = [1, 32], strides = [1, 1]} : vector<1x128xf32> to vector<1x32xf32>
    %386 = arith.mulf %383, %357 : vector<1x32xf32>
    %387 = arith.mulf %382, %384 : vector<1x32xf32>
    %388 = arith.addf %386, %387 : vector<1x32xf32>
    %389 = math.tanh %388 : vector<1x32xf32>
    %390 = arith.mulf %385, %389 : vector<1x32xf32>
    %cst_60 = arith.constant dense<0.000000e+00> : vector<1x128xf32>
    %391 = tpu.matmul %390, %17, %cst_60 {dimension_numbers = #tpu.dot_dimension_numbers<[1], [0], [0], [1], [0, 0, 1, 1], [], []>} : vector<1x32xf32>, vector<32x128xf32>, vector<1x128xf32> -> vector<1x128xf32>
    %392 = arith.addf %391, %18 : vector<1x128xf32>
    %cst_61 = arith.constant dense<0xFF800000> : vector<1xf32>
    %393 = vector.multi_reduction <maximumf>, %392, %cst_61 [1] : vector<1x128xf32> to vector<1xf32>
    %394 = vector.shape_cast %393 : vector<1xf32> to vector<1x1xf32>
    %395 = vector.broadcast %394 : vector<1x1xf32> to vector<1x128xf32>
    %396 = arith.subf %392, %395 : vector<1x128xf32>
    %397 = math.exp %396 : vector<1x128xf32>
    %cst_62 = arith.constant dense<0.000000e+00> : vector<1xf32>
    %398 = vector.multi_reduction <add>, %397, %cst_62 [1] : vector<1x128xf32> to vector<1xf32>
    %399 = vector.shape_cast %398 : vector<1xf32> to vector<1x1xf32>
    %400 = math.log %399 : vector<1x1xf32>
    %401 = arith.addf %400, %394 : vector<1x1xf32>
    %402 = vector.broadcast %401 : vector<1x1xf32> to vector<1x128xf32>
    %403 = arith.subf %392, %402 : vector<1x128xf32>
    %c7 = arith.constant 7 : index
    %c0_63 = arith.constant 0 : index
    %404 = vector.load %arg7[%c7, %c0_63] : memref<8x128xf32, #tpu.memory_space<vmem>>, vector<1x128xf32>
    tpu.vector_store %arg7[%c7, %c0_63], %403 {strides = array<i32>} : memref<8x128xf32, #tpu.memory_space<vmem>>, vector<1x128xf32>,
    return
  }
}

</mosaic_0001>

<llo_original>
// kernel: tpu_custom_call.1
$region0: #{tpu_custom_call.1}
  #allocation0 [shape = 'u32[]', space=smem, size = 0x4, offset = 0x4, fixed_abs, tag = 'smem constant byte address 0x4 - core index']
  #allocation1 [shape = 'u32[144,128]{1,0:T(1,128)}', space=vmem, size = 0x12000, scoped, tag = 'internal scratch']
  %s0 = inlined_call_operand.hbm [shape: f32[8,16], index: 0, kind: input, shape index: {}]
  %s1 = inlined_call_operand.hbm [shape: f32[16,128], index: 1, kind: input, shape index: {}]
  %s2 = inlined_call_operand.vmem [shape: f32[1,128], index: 2, kind: input, shape index: {}]
  %s3 = inlined_call_operand.hbm [shape: f32[64,256], index: 3, kind: input, shape index: {}]
  %s4 = inlined_call_operand.vmem [shape: f32[1,1,128], index: 4, kind: input, shape index: {}]
  %s5 = inlined_call_operand.hbm [shape: f32[32,128], index: 5, kind: input, shape index: {}]
  %s6 = inlined_call_operand.vmem [shape: f32[1,128], index: 6, kind: input, shape index: {}]
  %s7 = inlined_call_operand.hbm [shape: f32[8,128], index: 7, kind: output, shape index: {}]
  %s8 = sld [smem:[#allocation0]]
  $region54: #{tpu_custom_call.1} parent=0
    _
  %s10 = ssub.s32 1, %s8
  %s11 = scalar_select 0, %s10, %s8
  $region1: #{tpu_custom_call.1} parent=0
    #allocation2 [shape = 'u8[4096]{0}', space=vmem, size = 0x1000, scoped, tag = 'input window, operand 0, single buffered']
    #allocation3 [shape = 's32[1]{0}', space=sflag, size = 0x4, scoped, tag = 'scoped memory for tpu_custom_call.1']
    #allocation4 [shape = 's32[1]{0}', space=sflag, size = 0x4, scoped, tag = 'scoped memory for tpu_custom_call.1']
    #allocation5 [shape = 'u8[8192]{0}', space=vmem, size = 0x2000, scoped, tag = 'input window, operand 1, single buffered']
    #allocation6 [shape = 's32[1]{0}', space=sflag, size = 0x4, scoped, tag = 'scoped memory for tpu_custom_call.1']
    #allocation7 [shape = 'u8[65536]{0}', space=vmem, size = 0x10000, scoped, tag = 'input window, operand 3, single buffered']
    #allocation8 [shape = 'u8[16384]{0}', space=vmem, size = 0x4000, scoped, tag = 'input window, operand 5, single buffered']
    #allocation9 [shape = 's32[1]{0}', space=sflag, size = 0x4, scoped, tag = 'scoped memory for tpu_custom_call.1']
    #allocation10 [shape = 'u8[4096]{0}', space=vmem, size = 0x1000, scoped, tag = 'output window, operand 0, single buffered']
    %12 = vsyncpa [#allocation3], 0
    %13 = vsyncpa [#allocation6], 0
    %14 = vsyncpa [#allocation9], 0
    %15 = vsyncpa [#allocation4], 0
    // Predicated region
    $region2: #{tpu_custom_call.1} parent=1 // pred_check
      _
    $region3: #{tpu_custom_call.1} parent=1 // pred_check_branch
      %17 = sbr.rel (0) target = $region5
    $region4: #{tpu_custom_call.1} parent=1 // pred_region
      %s19 = ssub.s32 128, 128
      %20 = vsyncadd [#allocation3], %s19
      %s22 = sshll.u32 [#allocation2], 4
      %s23 = int_to_ptr.vmem [resolvable:$true] %s22
      %25 = dma.hbm_to_vmem [thread:$0]  %s0, 128, %s23, [#allocation3]
    $region5: #{tpu_custom_call.1} parent=1 // pred_fallthru
      _
    // Predicated region
    $region6: #{tpu_custom_call.1} parent=1 // pred_check
      _
    $region7: #{tpu_custom_call.1} parent=1 // pred_check_branch
      %27 = sbr.rel (0) target = $region9
    $region8: #{tpu_custom_call.1} parent=1 // pred_region
      %s29 = ssub.s32 256, 256
      %30 = vsyncadd [#allocation6], %s29
      %s31 = sshll.u32 [#allocation5], 4
      %s32 = int_to_ptr.vmem [resolvable:$true] %s31
      %37 = dma.hbm_to_vmem [thread:$0]  %s1, 256, %s32, [#allocation6], 128, 128, 8
    $region9: #{tpu_custom_call.1} parent=1 // pred_fallthru
      _
    // Predicated region
    $region10: #{tpu_custom_call.1} parent=1 // pred_check
      _
    $region11: #{tpu_custom_call.1} parent=1 // pred_check_branch
      %39 = sbr.rel (0) target = $region13
    $region12: #{tpu_custom_call.1} parent=1 // pred_region
      _
    $region13: #{tpu_custom_call.1} parent=1 // pred_fallthru
      _
    // Predicated region
    $region14: #{tpu_custom_call.1} parent=1 // pred_check
      _
    $region15: #{tpu_custom_call.1} parent=1 // pred_check_branch
      %41 = sbr.rel (0) target = $region17
    $region16: #{tpu_custom_call.1} parent=1 // pred_region
      %s43 = ssub.s32 2048, 2048
      %44 = vsyncadd [#allocation6], %s43
      %s45 = sshll.u32 [#allocation7], 4
      %s46 = int_to_ptr.vmem [resolvable:$true] %s45
      %51 = dma.hbm_to_vmem [thread:$0]  %s3, 2048, %s46, [#allocation6], 256, 256, 16
    $region17: #{tpu_custom_call.1} parent=1 // pred_fallthru
      _
    // Predicated region
    $region18: #{tpu_custom_call.1} parent=1 // pred_check
      _
    $region19: #{tpu_custom_call.1} parent=1 // pred_check_branch
      %53 = sbr.rel (0) target = $region21
    $region20: #{tpu_custom_call.1} parent=1 // pred_region
      _
    $region21: #{tpu_custom_call.1} parent=1 // pred_fallthru
      _
    // Predicated region
    $region22: #{tpu_custom_call.1} parent=1 // pred_check
      _
    $region23: #{tpu_custom_call.1} parent=1 // pred_check_branch
      %55 = sbr.rel (0) target = $region25
    $region24: #{tpu_custom_call.1} parent=1 // pred_region
      %s57 = ssub.s32 512, 512
      %58 = vsyncadd [#allocation9], %s57
      %s59 = sshll.u32 [#allocation8], 4
      %s60 = int_to_ptr.vmem [resolvable:$true] %s59
      %65 = dma.hbm_to_vmem [thread:$0]  %s5, 512, %s60, [#allocation9], 128, 128, 8
    $region25: #{tpu_custom_call.1} parent=1 // pred_fallthru
      _
    // Predicated region
    $region26: #{tpu_custom_call.1} parent=1 // pred_check
      _
    $region27: #{tpu_custom_call.1} parent=1 // pred_check_branch
      %67 = sbr.rel (0) target = $region29
    $region28: #{tpu_custom_call.1} parent=1 // pred_region
      _
    $region29: #{tpu_custom_call.1} parent=1 // pred_fallthru
      _
    // Predicated region
    $region30: #{tpu_custom_call.1} parent=1 // pred_check
      _
    $region31: #{tpu_custom_call.1} parent=1 // pred_check_branch
      %69 = sbr.rel (0) target = $region33
    $region32: #{tpu_custom_call.1} parent=1 // pred_region
      %70 = dma.done [#allocation3], 128
    $region33: #{tpu_custom_call.1} parent=1 // pred_fallthru
      _
    // Predicated region
    $region34: #{tpu_custom_call.1} parent=1 // pred_check
      _
    $region35: #{tpu_custom_call.1} parent=1 // pred_check_branch
      %72 = sbr.rel (0) target = $region37
    $region36: #{tpu_custom_call.1} parent=1 // pred_region
      %73 = dma.done [#allocation6], 256
    $region37: #{tpu_custom_call.1} parent=1 // pred_fallthru
      _
    // Predicated region
    $region38: #{tpu_custom_call.1} parent=1 // pred_check
      _
    $region39: #{tpu_custom_call.1} parent=1 // pred_check_branch
      %75 = sbr.rel (0) target = $region41
    $region40: #{tpu_custom_call.1} parent=1 // pred_region
      %76 = dma.done [#allocation6], 2048
    $region41: #{tpu_custom_call.1} parent=1 // pred_fallthru
      _
    // Predicated region
    $region42: #{tpu_custom_call.1} parent=1 // pred_check
      _
    $region43: #{tpu_custom_call.1} parent=1 // pred_check_branch
      %78 = sbr.rel (0) target = $region45
    $region44: #{tpu_custom_call.1} parent=1 // pred_region
      %79 = dma.done [#allocation9], 512
    $region45: #{tpu_custom_call.1} parent=1 // pred_fallthru
      _
    %v80 = vld [vmem:[#allocation2] sm:$0xff]
    %v81 = vld [vmem:[#allocation5] sm:$0xff]
    %v82 = vld [vmem:[#allocation5 + $0x8] sm:$0xff]
    %v83 = vld [vmem:[%s2] sm:$0x1]
    %v85 = vlaneseq
    %v86 = vshrl.u32 %v85, 7
    %v87 = vsub.s32 0, %v86
    %v88 = vrot.slane %v83, %v87
    %vm90 = vcmask 130048
    %v92 = vsel %vm90, %v80, 0
    %94 = vmatprep.subr.mxu0 0.0
    %95 = vmatpush1.msra.mxu0 %v81
    %96 = vmatprep.subr.mxu0 0.0
    %97 = vmatpush1.msra.mxu0 %v82
    %98 = vmatprep.subr.mxu0 0.0
    %99 = vmatpush1.msra.mxu0 0.0
    %100 = vmatprep.subr.mxu0 0.0
    %101 = vmatpush1.msra.mxu0 0.0
    %102 = vmatprep.subr.mxu0 0.0
    %103 = vmatpush1.msra.mxu0 0.0
    %104 = vmatprep.subr.mxu0 0.0
    %105 = vmatpush1.msra.mxu0 0.0
    %106 = vmatprep.subr.mxu0 0.0
    %107 = vmatpush1.msra.mxu0 0.0
    %108 = vmatprep.subr.mxu0 0.0
    %109 = vmatpush1.msra.mxu0 0.0
    %110 = vmatprep.subr.mxu0 0.0
    %111 = vmatpush1.msra.mxu0 0.0
    %112 = vmatprep.subr.mxu0 0.0
    %113 = vmatpush1.msra.mxu0 0.0
    %114 = vmatprep.subr.mxu0 0.0
    %115 = vmatpush1.msra.mxu0 0.0
    %116 = vmatprep.subr.mxu0 0.0
    %117 = vmatpush1.msra.mxu0 0.0
    %118 = vmatprep.subr.mxu0 0.0
    %119 = vmatpush1.msra.mxu0 0.0
    %120 = vmatprep.subr.mxu0 0.0
    %121 = vmatpush1.msra.mxu0 0.0
    %122 = vmatprep.subr.mxu0 0.0
    %123 = vmatpush1.msra.mxu0 0.0
    %124 = vmatprep.subr.mxu0 0.0
    %125 = vmatpush1.msra.mxu0 0.0
    %126 = vmatprep.subr.mxu0 0.0
    %127 = vmatpush1.msra.mxu0 0.0
    %128 = vmatprep.subr.mxu0 0.0
    %129 = vmatpush1.msra.mxu0 0.0
    %130 = vmatprep.subr.mxu0 0.0
    %131 = vmatpush1.msra.mxu0 0.0
    %132 = vmatprep.subr.mxu0 0.0
    %133 = vmatpush1.msra.mxu0 0.0
    %134 = vmatprep.subr.mxu0 0.0
    %135 = vmatpush1.msra.mxu0 0.0
    %136 = vmatprep.subr.mxu0 0.0
    %137 = vmatpush1.msra.mxu0 0.0
    %138 = vmatprep.subr.mxu0 0.0
    %139 = vmatpush1.msra.mxu0 0.0
    %140 = vmatprep.subr.mxu0 0.0
    %141 = vmatpush1.msra.mxu0 0.0
    %142 = vmatprep.subr.mxu0 0.0
    %143 = vmatpush1.msra.mxu0 0.0
    %144 = vmatprep.subr.mxu0 0.0
    %145 = vmatpush1.msra.mxu0 0.0
    %146 = vmatprep.subr.mxu0 0.0
    %147 = vmatpush1.msra.mxu0 0.0
    %148 = vmatprep.subr.mxu0 0.0
    %149 = vmatpush1.msra.mxu0 0.0
    %150 = vmatprep.subr.mxu0 0.0
    %151 = vmatpush1.msra.mxu0 0.0
    %152 = vmatprep.subr.mxu0 0.0
    %153 = vmatpush1.msra.mxu0 0.0
    %154 = vmatprep.subr.mxu0 0.0
    %155 = vmatpush1.msra.mxu0 0.0
    %156 = vmatprep.subr.mxu0 0.0
    %157 = vmatpush1.msra.mxu0 0.0
    %158 = vmatprep.mubr.f32.mxu0 0.0
    %159 = vmatmul.mubr.f32.gmra.mrb[0].mxu0 %v92
    %v160 = vpop.f32.mrb[0].mxu0
    %v161 = vadd.f32 %v88, %v160
    %v162 = vpop.f32.mrb[0].mxu0
    %163 = vdwg.mxu0
    %v164 = vld [vmem:[#allocation7] sm:$0xff]
    %v165 = vld [vmem:[#allocation7 + $0x8] sm:$0xff]
    %v166 = vld [vmem:[#allocation7 + $0x10] sm:$0xff]
    %v167 = vld [vmem:[#allocation7 + $0x18] sm:$0xff]
    %v168 = vld [vmem:[#allocation7 + $0x20] sm:$0xff]
    %v169 = vld [vmem:[#allocation7 + $0x28] sm:$0xff]
    %v170 = vld [vmem:[#allocation7 + $0x30] sm:$0xff]
    %v171 = vld [vmem:[#allocation7 + $0x38] sm:$0xff]
    %v172 = vld [vmem:[#allocation7 + $0x40] sm:$0xff]
    %v173 = vld [vmem:[#allocation7 + $0x48] sm:$0xff]
    %v174 = vld [vmem:[#allocation7 + $0x50] sm:$0xff]
    %v175 = vld [vmem:[#allocation7 + $0x58] sm:$0xff]
    %v176 = vld [vmem:[#allocation7 + $0x60] sm:$0xff]
    %v177 = vld [vmem:[#allocation7 + $0x68] sm:$0xff]
    %v178 = vld [vmem:[#allocation7 + $0x70] sm:$0xff]
    %v179 = vld [vmem:[#allocation7 + $0x78] sm:$0xff]
    %v180 = vld [vmem:[%s4] sm:$0x1]
    %v181 = vld [vmem:[#allocation8] sm:$0xff]
    %v182 = vld [vmem:[#allocation8 + $0x8] sm:$0xff]
    %v183 = vld [vmem:[#allocation8 + $0x10] sm:$0xff]
    %v184 = vld [vmem:[#allocation8 + $0x18] sm:$0xff]
    %v185 = vld [vmem:[%s6] sm:$0x1]
    %v186 = vlaneseq
    %v187 = vand.u32 %v186, 127
    %vm188 = vcmp.ge.s32.totalorder %v187, 64
    %vm189 = vcmp.lt.s32.totalorder %v187, 96
    %vm190 = vmand %vm188, %vm189
    %v191 = vsel %vm190, 1.0, 0.5
    %v192 = vsel %vm190, 0.0, 0.5
    %vm193 = vcmask 523264
    %v195 = vsel %vm193, 0.0, 0
    %197 = vmatprep.subr.mxu0 %v165
    %198 = vmatpush1.msra.mxu0 %v164
    %199 = vmatprep.subr.mxu0 %v167
    %200 = vmatpush1.msra.mxu0 %v166
    %201 = vmatprep.subr.mxu0 %v169
    %202 = vmatpush1.msra.mxu0 %v168
    %203 = vmatprep.subr.mxu0 %v171
    %204 = vmatpush1.msra.mxu0 %v170
    %205 = vmatprep.subr.mxu0 %v173
    %206 = vmatpush1.msra.mxu0 %v172
    %207 = vmatprep.subr.mxu0 %v175
    %208 = vmatpush1.msra.mxu0 %v174
    %209 = vmatprep.subr.mxu0 %v177
    %210 = vmatpush1.msra.mxu0 %v176
    %211 = vmatprep.subr.mxu0 %v179
    %212 = vmatpush1.msra.mxu0 %v178
    %213 = vmatprep.subr.mxu0 0.0
    %214 = vmatpush1.msra.mxu0 0.0
    %215 = vmatprep.subr.mxu0 0.0
    %216 = vmatpush1.msra.mxu0 0.0
    %217 = vmatprep.subr.mxu0 0.0
    %218 = vmatpush1.msra.mxu0 0.0
    %219 = vmatprep.subr.mxu0 0.0
    %220 = vmatpush1.msra.mxu0 0.0
    %221 = vmatprep.subr.mxu0 0.0
    %222 = vmatpush1.msra.mxu0 0.0
    %223 = vmatprep.subr.mxu0 0.0
    %224 = vmatpush1.msra.mxu0 0.0
    %225 = vmatprep.subr.mxu0 0.0
    %226 = vmatpush1.msra.mxu0 0.0
    %227 = vmatprep.subr.mxu0 0.0
    %228 = vmatpush1.msra.mxu0 0.0
    %229 = vmatprep.subr.mxu0 0.0
    %230 = vmatpush1.msra.mxu0 0.0
    %231 = vmatprep.subr.mxu0 0.0
    %232 = vmatpush1.msra.mxu0 0.0
    %233 = vmatprep.subr.mxu0 0.0
    %234 = vmatpush1.msra.mxu0 0.0
    %235 = vmatprep.subr.mxu0 0.0
    %236 = vmatpush1.msra.mxu0 0.0
    %237 = vmatprep.subr.mxu0 0.0
    %238 = vmatpush1.msra.mxu0 0.0
    %239 = vmatprep.subr.mxu0 0.0
    %240 = vmatpush1.msra.mxu0 0.0
    %241 = vmatprep.subr.mxu0 0.0
    %242 = vmatpush1.msra.mxu0 0.0
    %243 = vmatprep.subr.mxu0 0.0
    %244 = vmatpush1.msra.mxu0 0.0
    %245 = vmatprep.subr.mxu0 0.0
    %246 = vmatpush1.msra.mxu0 0.0
    %247 = vmatprep.subr.mxu0 0.0
    %248 = vmatpush1.msra.mxu0 0.0
    %249 = vmatprep.subr.mxu0 0.0
    %250 = vmatpush1.msra.mxu0 0.0
    %251 = vmatprep.subr.mxu0 0.0
    %252 = vmatpush1.msra.mxu0 0.0
    %253 = vmatprep.subr.mxu0 0.0
    %254 = vmatpush1.msra.mxu0 0.0
    %255 = vmatprep.subr.mxu0 0.0
    %256 = vmatpush1.msra.mxu0 0.0
    %257 = vmatprep.subr.mxu0 0.0
    %258 = vmatpush1.msra.mxu0 0.0
    %259 = vmatprep.subr.mxu0 0.0
    %260 = vmatpush1.msra.mxu0 0.0
    %261 = vmatprep.mubr.f32.mxu0 0.0
    %262 = vmatmul.mubr.f32.gmra.mrb[0].mxu0 %v195
    %v263 = vpop.f32.mrb[0].mxu0
    %v264 = vadd.f32 0.0, %v263
    %v265 = vpop.f32.mrb[0].mxu0
    %266 = vdwg.mxu0
    %v267 = vadd.f32 %v264, %v161
    %v268 = vmul.f32 %v267, %v191
    %v269 = vtanh.pop %v268
    %v270 = vmul.f32 %v269, %v191
    %v271 = vadd.f32 %v270, %v192
    %v272 = vmul.f32 %v271, 0.0
    %274 = vrot.lane.b32.xlu0 %v271, 64
    %v275 = vpop.permute.xlu0 %274
    %v277 = vmul.f32 %v271, %v275
    %279 = vrot.lane.b32.xlu0 %v277, 32
    %v280 = vpop.permute.xlu0 %279
    %v282 = vadd.f32 %v272, %v280
    %v283 = vtanh.pop %v282
    %285 = vrot.lane.b32.xlu0 %v283, 64
    %v286 = vpop.permute.xlu0 %285
    %v288 = vmul.f32 %v271, %v286
    %290 = vrot.lane.b32.xlu0 %v288, 32
    %v291 = vpop.permute.xlu0 %290
    %vm293 = vcmask 261120
    %v294 = vsel %vm293, %v291, 0.0
    %v296 = vsel %vm193, %v294, 0
    %298 = vmatprep.subr.mxu0 %v165
    %299 = vmatpush1.msra.mxu0 %v164
    %300 = vmatprep.subr.mxu0 %v167
    %301 = vmatpush1.msra.mxu0 %v166
    %302 = vmatprep.subr.mxu0 %v169
    %303 = vmatpush1.msra.mxu0 %v168
    %304 = vmatprep.subr.mxu0 %v171
    %305 = vmatpush1.msra.mxu0 %v170
    %306 = vmatprep.subr.mxu0 %v173
    %307 = vmatpush1.msra.mxu0 %v172
    %308 = vmatprep.subr.mxu0 %v175
    %309 = vmatpush1.msra.mxu0 %v174
    %310 = vmatprep.subr.mxu0 %v177
    %311 = vmatpush1.msra.mxu0 %v176
    %312 = vmatprep.subr.mxu0 %v179
    %313 = vmatpush1.msra.mxu0 %v178
    %314 = vmatprep.subr.mxu0 0.0
    %315 = vmatpush1.msra.mxu0 0.0
    %316 = vmatprep.subr.mxu0 0.0
    %317 = vmatpush1.msra.mxu0 0.0
    %318 = vmatprep.subr.mxu0 0.0
    %319 = vmatpush1.msra.mxu0 0.0
    %320 = vmatprep.subr.mxu0 0.0
    %321 = vmatpush1.msra.mxu0 0.0
    %322 = vmatprep.subr.mxu0 0.0
    %323 = vmatpush1.msra.mxu0 0.0
    %324 = vmatprep.subr.mxu0 0.0
    %325 = vmatpush1.msra.mxu0 0.0
    %326 = vmatprep.subr.mxu0 0.0
    %327 = vmatpush1.msra.mxu0 0.0
    %328 = vmatprep.subr.mxu0 0.0
    %329 = vmatpush1.msra.mxu0 0.0
    %330 = vmatprep.subr.mxu0 0.0
    %331 = vmatpush1.msra.mxu0 0.0
    %332 = vmatprep.subr.mxu0 0.0
    %333 = vmatpush1.msra.mxu0 0.0
    %334 = vmatprep.subr.mxu0 0.0
    %335 = vmatpush1.msra.mxu0 0.0
    %336 = vmatprep.subr.mxu0 0.0
    %337 = vmatpush1.msra.mxu0 0.0
    %338 = vmatprep.subr.mxu0 0.0
    %339 = vmatpush1.msra.mxu0 0.0
    %340 = vmatprep.subr.mxu0 0.0
    %341 = vmatpush1.msra.mxu0 0.0
    %342 = vmatprep.subr.mxu0 0.0
    %343 = vmatpush1.msra.mxu0 0.0
    %344 = vmatprep.subr.mxu0 0.0
    %345 = vmatpush1.msra.mxu0 0.0
    %346 = vmatprep.subr.mxu0 0.0
    %347 = vmatpush1.msra.mxu0 0.0
    %348 = vmatprep.subr.mxu0 0.0
    %349 = vmatpush1.msra.mxu0 0.0
    %350 = vmatprep.subr.mxu0 0.0
    %351 = vmatpush1.msra.mxu0 0.0
    %352 = vmatprep.subr.mxu0 0.0
    %353 = vmatpush1.msra.mxu0 0.0
    %354 = vmatprep.subr.mxu0 0.0
    %355 = vmatpush1.msra.mxu0 0.0
    %356 = vmatprep.subr.mxu0 0.0
    %357 = vmatpush1.msra.mxu0 0.0
    %358 = vmatprep.subr.mxu0 0.0
    %359 = vmatpush1.msra.mxu0 0.0
    %360 = vmatprep.subr.mxu0 0.0
    %361 = vmatpush1.msra.mxu0 0.0
    %362 = vmatprep.mubr.f32.mxu0 0.0
    %363 = vmatmul.mubr.f32.gmra.mrb[0].mxu0 %v296
    %v364 = vpop.f32.mrb[0].mxu0
    %v365 = vadd.f32 0.0, %v364
    %v366 = vpop.f32.mrb[0].mxu0
    %v367 = vadd.f32 0.0, %v366
    %368 = vdwg.mxu0
    %v370 = vrot.slane %v161, 1
    %v372 = vadd.f32 %v365, %v370
    %v373 = vmul.f32 %v372, %v191
    %v374 = vtanh.pop %v373
    %v375 = vmul.f32 %v374, %v191
    %v376 = vadd.f32 %v375, %v192
    %v377 = vmul.f32 %v376, %v282
    %379 = vrot.lane.b32.xlu0 %v376, 64
    %v380 = vpop.permute.xlu0 %379
    %v382 = vmul.f32 %v376, %v380
    %384 = vrot.lane.b32.xlu0 %v382, 32
    %v385 = vpop.permute.xlu0 %384
    %v387 = vadd.f32 %v377, %v385
    %v388 = vtanh.pop %v387
    %390 = vrot.lane.b32.xlu0 %v388, 64
    %v391 = vpop.permute.xlu0 %390
    %v393 = vmul.f32 %v376, %v391
    %v394 = vadd.f32 %v367, %v180
    %v395 = vmul.f32 %v394, %v191
    %v396 = vtanh.pop %v395
    %v397 = vmul.f32 %v396, %v191
    %v398 = vadd.f32 %v397, %v192
    %v399 = vmul.f32 %v398, 0.0
    %401 = vrot.lane.b32.xlu0 %v398, 64
    %v402 = vpop.permute.xlu0 %401
    %v404 = vmul.f32 %v398, %v402
    %406 = vrot.lane.b32.xlu0 %v404, 32
    %v407 = vpop.permute.xlu0 %406
    %v409 = vadd.f32 %v399, %v407
    %v410 = vtanh.pop %v409
    %412 = vrot.lane.b32.xlu0 %v410, 64
    %v413 = vpop.permute.xlu0 %412
    %v415 = vmul.f32 %v398, %v413
    %417 = vrot.lane.b32.xlu0 %v415, 32
    %v418 = vpop.permute.xlu0 %417
    %v419 = vsel %vm293, %v418, 0
    %421 = vmatprep.subr.mxu0 0.0
    %422 = vmatpush1.msra.mxu0 %v181
    %423 = vmatprep.subr.mxu0 0.0
    %424 = vmatpush1.msra.mxu0 %v182
    %425 = vmatprep.subr.mxu0 0.0
    %426 = vmatpush1.msra.mxu0 %v183
    %427 = vmatprep.subr.mxu0 0.0
    %428 = vmatpush1.msra.mxu0 %v184
    %429 = vmatprep.subr.mxu0 0.0
    %430 = vmatpush1.msra.mxu0 0.0
    %431 = vmatprep.subr.mxu0 0.0
    %432 = vmatpush1.msra.mxu0 0.0
    %433 = vmatprep.subr.mxu0 0.0
    %434 = vmatpush1.msra.mxu0 0.0
    %435 = vmatprep.subr.mxu0 0.0
    %436 = vmatpush1.msra.mxu0 0.0
    %437 = vmatprep.subr.mxu0 0.0
    %438 = vmatpush1.msra.mxu0 0.0
    %439 = vmatprep.subr.mxu0 0.0
    %440 = vmatpush1.msra.mxu0 0.0
    %441 = vmatprep.subr.mxu0 0.0
    %442 = vmatpush1.msra.mxu0 0.0
    %443 = vmatprep.subr.mxu0 0.0
    %444 = vmatpush1.msra.mxu0 0.0
    %445 = vmatprep.subr.mxu0 0.0
    %446 = vmatpush1.msra.mxu0 0.0
    %447 = vmatprep.subr.mxu0 0.0
    %448 = vmatpush1.msra.mxu0 0.0
    %449 = vmatprep.subr.mxu0 0.0
    %450 = vmatpush1.msra.mxu0 0.0
    %451 = vmatprep.subr.mxu0 0.0
    %452 = vmatpush1.msra.mxu0 0.0
    %453 = vmatprep.subr.mxu0 0.0
    %454 = vmatpush1.msra.mxu0 0.0
    %455 = vmatprep.subr.mxu0 0.0
    %456 = vmatpush1.msra.mxu0 0.0
    %457 = vmatprep.subr.mxu0 0.0
    %458 = vmatpush1.msra.mxu0 0.0
    %459 = vmatprep.subr.mxu0 0.0
    %460 = vmatpush1.msra.mxu0 0.0
    %461 = vmatprep.subr.mxu0 0.0
    %462 = vmatpush1.msra.mxu0 0.0
    %463 = vmatprep.subr.mxu0 0.0
    %464 = vmatpush1.msra.mxu0 0.0
    %465 = vmatprep.subr.mxu0 0.0
    %466 = vmatpush1.msra.mxu0 0.0
    %467 = vmatprep.subr.mxu0 0.0
    %468 = vmatpush1.msra.mxu0 0.0
    %469 = vmatprep.subr.mxu0 0.0
    %470 = vmatpush1.msra.mxu0 0.0
    %471 = vmatprep.subr.mxu0 0.0
    %472 = vmatpush1.msra.mxu0 0.0
    %473 = vmatprep.subr.mxu0 0.0
    %474 = vmatpush1.msra.mxu0 0.0
    %475 = vmatprep.subr.mxu0 0.0
    %476 = vmatpush1.msra.mxu0 0.0
    %477 = vmatprep.subr.mxu0 0.0
    %478 = vmatpush1.msra.mxu0 0.0
    %479 = vmatprep.subr.mxu0 0.0
    %480 = vmatpush1.msra.mxu0 0.0
    %481 = vmatprep.subr.mxu0 0.0
    %482 = vmatpush1.msra.mxu0 0.0
    %483 = vmatprep.subr.mxu0 0.0
    %484 = vmatpush1.msra.mxu0 0.0
    %485 = vmatprep.mubr.f32.mxu0 0.0
    %486 = vmatmul.mubr.f32.gmra.mrb[0].mxu0 %v419
    %v487 = vpop.f32.mrb[0].mxu0
    %v488 = vadd.f32 %v185, %v487
    %v489 = vpop.f32.mrb[0].mxu0
    %490 = vdwg.mxu0
    %vm491 = vcmask 1040384
    %v492 = vsel %vm491, %v488, -inf
    %493 = vmax.xlane.f32.xlu0 %v492
    %v494 = vpop.xlane.xlu0 %493
    %v495 = vsub.f32 %v488, %v494
    %v496 = vmul.f32 %v495, 1.442695
    %v497 = vpow.pop %v496
    %v498 = vsel %vm491, %v497, 0.0
    %499 = vadd.xlane.f32.xlu0 %v498
    %v500 = vpop.xlane.xlu0 %499
    %v501 = vlog2.pop %v500
    %v502 = vmul.f32 %v501, 0.6931472
    %v503 = vadd.f32 %v502, %v494
    %v504 = vsub.f32 %v488, %v503
    %505 = vst [vmem:[#allocation10] sm:$0x1] %v504
    %507 = vrot.lane.b32.xlu0 %v393, 32
    %v508 = vpop.permute.xlu0 %507
    %510 = vrot.lane.b32.xlu0 %v415, 64
    %v511 = vpop.permute.xlu0 %510
    %v513 = vsel %vm293, %v508, %v511
    %v515 = vsel %vm193, %v513, 0
    %517 = vmatprep.subr.mxu0 %v165
    %518 = vmatpush1.msra.mxu0 %v164
    %519 = vmatprep.subr.mxu0 %v167
    %520 = vmatpush1.msra.mxu0 %v166
    %521 = vmatprep.subr.mxu0 %v169
    %522 = vmatpush1.msra.mxu0 %v168
    %523 = vmatprep.subr.mxu0 %v171
    %524 = vmatpush1.msra.mxu0 %v170
    %525 = vmatprep.subr.mxu0 %v173
    %526 = vmatpush1.msra.mxu0 %v172
    %527 = vmatprep.subr.mxu0 %v175
    %528 = vmatpush1.msra.mxu0 %v174
    %529 = vmatprep.subr.mxu0 %v177
    %530 = vmatpush1.msra.mxu0 %v176
    %531 = vmatprep.subr.mxu0 %v179
    %532 = vmatpush1.msra.mxu0 %v178
    %533 = vmatprep.subr.mxu0 0.0
    %534 = vmatpush1.msra.mxu0 0.0
    %535 = vmatprep.subr.mxu0 0.0
    %536 = vmatpush1.msra.mxu0 0.0
    %537 = vmatprep.subr.mxu0 0.0
    %538 = vmatpush1.msra.mxu0 0.0
    %539 = vmatprep.subr.mxu0 0.0
    %540 = vmatpush1.msra.mxu0 0.0
    %541 = vmatprep.subr.mxu0 0.0
    %542 = vmatpush1.msra.mxu0 0.0
    %543 = vmatprep.subr.mxu0 0.0
    %544 = vmatpush1.msra.mxu0 0.0
    %545 = vmatprep.subr.mxu0 0.0
    %546 = vmatpush1.msra.mxu0 0.0
    %547 = vmatprep.subr.mxu0 0.0
    %548 = vmatpush1.msra.mxu0 0.0
    %549 = vmatprep.subr.mxu0 0.0
    %550 = vmatpush1.msra.mxu0 0.0
    %551 = vmatprep.subr.mxu0 0.0
    %552 = vmatpush1.msra.mxu0 0.0
    %553 = vmatprep.subr.mxu0 0.0
    %554 = vmatpush1.msra.mxu0 0.0
    %555 = vmatprep.subr.mxu0 0.0
    %556 = vmatpush1.msra.mxu0 0.0
    %557 = vmatprep.subr.mxu0 0.0
    %558 = vmatpush1.msra.mxu0 0.0
    %559 = vmatprep.subr.mxu0 0.0
    %560 = vmatpush1.msra.mxu0 0.0
    %561 = vmatprep.subr.mxu0 0.0
    %562 = vmatpush1.msra.mxu0 0.0
    %563 = vmatprep.subr.mxu0 0.0
    %564 = vmatpush1.msra.mxu0 0.0
    %565 = vmatprep.subr.mxu0 0.0
    %566 = vmatpush1.msra.mxu0 0.0
    %567 = vmatprep.subr.mxu0 0.0
    %568 = vmatpush1.msra.mxu0 0.0
    %569 = vmatprep.subr.mxu0 0.0
    %570 = vmatpush1.msra.mxu0 0.0
    %571 = vmatprep.subr.mxu0 0.0
    %572 = vmatpush1.msra.mxu0 0.0
    %573 = vmatprep.subr.mxu0 0.0
    %574 = vmatpush1.msra.mxu0 0.0
    %575 = vmatprep.subr.mxu0 0.0
    %576 = vmatpush1.msra.mxu0 0.0
    %577 = vmatprep.subr.mxu0 0.0
    %578 = vmatpush1.msra.mxu0 0.0
    %579 = vmatprep.subr.mxu0 0.0
    %580 = vmatpush1.msra.mxu0 0.0
    %581 = vmatprep.mubr.f32.mxu0 0.0
    %582 = vmatmul.mubr.f32.gmra.mrb[0].mxu0 %v515
    %v583 = vpop.f32.mrb[0].mxu0
    %v584 = vadd.f32 0.0, %v583
    %v585 = vpop.f32.mrb[0].mxu0
    %v586 = vadd.f32 0.0, %v585
    %587 = vdwg.mxu0
    %v588 = vrot.slane %v161, 2
    %v590 = vadd.f32 %v584, %v588
    %v591 = vmul.f32 %v590, %v191
    %v592 = vtanh.pop %v591
    %v593 = vmul.f32 %v592, %v191
    %v594 = vadd.f32 %v593, %v192
    %v595 = vmul.f32 %v594, %v387
    %597 = vrot.lane.b32.xlu0 %v594, 64
    %v598 = vpop.permute.xlu0 %597
    %v600 = vmul.f32 %v594, %v598
    %602 = vrot.lane.b32.xlu0 %v600, 32
    %v603 = vpop.permute.xlu0 %602
    %v605 = vadd.f32 %v595, %v603
    %v606 = vtanh.pop %v605
    %608 = vrot.lane.b32.xlu0 %v606, 64
    %v609 = vpop.permute.xlu0 %608
    %v611 = vmul.f32 %v594, %v609
    %v612 = vadd.f32 %v586, %v180
    %v613 = vmul.f32 %v612, %v191
    %v614 = vtanh.pop %v613
    %v615 = vmul.f32 %v614, %v191
    %v616 = vadd.f32 %v615, %v192
    %v617 = vmul.f32 %v616, %v409
    %619 = vrot.lane.b32.xlu0 %v616, 64
    %v620 = vpop.permute.xlu0 %619
    %v622 = vmul.f32 %v616, %v620
    %624 = vrot.lane.b32.xlu0 %v622, 32
    %v625 = vpop.permute.xlu0 %624
    %v627 = vadd.f32 %v617, %v625
    %v628 = vtanh.pop %v627
    %630 = vrot.lane.b32.xlu0 %v628, 64
    %v631 = vpop.permute.xlu0 %630
    %v633 = vmul.f32 %v616, %v631
    %635 = vrot.lane.b32.xlu0 %v633, 32
    %v636 = vpop.permute.xlu0 %635
    %v637 = vsel %vm293, %v636, 0
    %639 = vmatprep.subr.mxu0 0.0
    %640 = vmatpush1.msra.mxu0 %v181
    %641 = vmatprep.subr.mxu0 0.0
    %642 = vmatpush1.msra.mxu0 %v182
    %643 = vmatprep.subr.mxu0 0.0
    %644 = vmatpush1.msra.mxu0 %v183
    %645 = vmatprep.subr.mxu0 0.0
    %646 = vmatpush1.msra.mxu0 %v184
    %647 = vmatprep.subr.mxu0 0.0
    %648 = vmatpush1.msra.mxu0 0.0
    %649 = vmatprep.subr.mxu0 0.0
    %650 = vmatpush1.msra.mxu0 0.0
    %651 = vmatprep.subr.mxu0 0.0
    %652 = vmatpush1.msra.mxu0 0.0
    %653 = vmatprep.subr.mxu0 0.0
    %654 = vmatpush1.msra.mxu0 0.0
    %655 = vmatprep.subr.mxu0 0.0
    %656 = vmatpush1.msra.mxu0 0.0
    %657 = vmatprep.subr.mxu0 0.0
    %658 = vmatpush1.msra.mxu0 0.0
    %659 = vmatprep.subr.mxu0 0.0
    %660 = vmatpush1.msra.mxu0 0.0
    %661 = vmatprep.subr.mxu0 0.0
    %662 = vmatpush1.msra.mxu0 0.0
    %663 = vmatprep.subr.mxu0 0.0
    %664 = vmatpush1.msra.mxu0 0.0
    %665 = vmatprep.subr.mxu0 0.0
    %666 = vmatpush1.msra.mxu0 0.0
    %667 = vmatprep.subr.mxu0 0.0
    %668 = vmatpush1.msra.mxu0 0.0
    %669 = vmatprep.subr.mxu0 0.0
    %670 = vmatpush1.msra.mxu0 0.0
    %671 = vmatprep.subr.mxu0 0.0
    %672 = vmatpush1.msra.mxu0 0.0
    %673 = vmatprep.subr.mxu0 0.0
    %674 = vmatpush1.msra.mxu0 0.0
    %675 = vmatprep.subr.mxu0 0.0
    %676 = vmatpush1.msra.mxu0 0.0
    %677 = vmatprep.subr.mxu0 0.0
    %678 = vmatpush1.msra.mxu0 0.0
    %679 = vmatprep.subr.mxu0 0.0
    %680 = vmatpush1.msra.mxu0 0.0
    %681 = vmatprep.subr.mxu0 0.0
    %682 = vmatpush1.msra.mxu0 0.0
    %683 = vmatprep.subr.mxu0 0.0
    %684 = vmatpush1.msra.mxu0 0.0
    %685 = vmatprep.subr.mxu0 0.0
    %686 = vmatpush1.msra.mxu0 0.0
    %687 = vmatprep.subr.mxu0 0.0
    %688 = vmatpush1.msra.mxu0 0.0
    %689 = vmatprep.subr.mxu0 0.0
    %690 = vmatpush1.msra.mxu0 0.0
    %691 = vmatprep.subr.mxu0 0.0
    %692 = vmatpush1.msra.mxu0 0.0
    %693 = vmatprep.subr.mxu0 0.0
    %694 = vmatpush1.msra.mxu0 0.0
    %695 = vmatprep.subr.mxu0 0.0
    %696 = vmatpush1.msra.mxu0 0.0
    %697 = vmatprep.subr.mxu0 0.0
    %698 = vmatpush1.msra.mxu0 0.0
    %699 = vmatprep.subr.mxu0 0.0
    %700 = vmatpush1.msra.mxu0 0.0
    %701 = vmatprep.subr.mxu0 0.0
    %702 = vmatpush1.msra.mxu0 0.0
    %703 = vmatprep.mubr.f32.mxu0 0.0
    %704 = vmatmul.mubr.f32.gmra.mrb[0].mxu0 %v637
    %v705 = vpop.f32.mrb[0].mxu0
    %v706 = vadd.f32 %v185, %v705
    %v707 = vpop.f32.mrb[0].mxu0
    %708 = vdwg.mxu0
    %v709 = vsel %vm491, %v706, -inf
    %710 = vmax.xlane.f32.xlu0 %v709
    %v711 = vpop.xlane.xlu0 %710
    %v712 = vsub.f32 %v706, %v711
    %v713 = vmul.f32 %v712, 1.442695
    %v714 = vpow.pop %v713
    %v715 = vsel %vm491, %v714, 0.0
    %716 = vadd.xlane.f32.xlu0 %v715
    %v717 = vpop.xlane.xlu0 %716
    %v718 = vlog2.pop %v717
    %v719 = vmul.f32 %v718, 0.6931472
    %v720 = vadd.f32 %v719, %v711
    %v721 = vsub.f32 %v706, %v720
    %722 = vst [vmem:[#allocation10 + $0x1] sm:$0x1] %v721
    %724 = vrot.lane.b32.xlu0 %v611, 32
    %v725 = vpop.permute.xlu0 %724
    %727 = vrot.lane.b32.xlu0 %v633, 64
    %v728 = vpop.permute.xlu0 %727
    %v730 = vsel %vm293, %v725, %v728
    %v732 = vsel %vm193, %v730, 0
    %734 = vmatprep.subr.mxu0 %v165
    %735 = vmatpush1.msra.mxu0 %v164
    %736 = vmatprep.subr.mxu0 %v167
    %737 = vmatpush1.msra.mxu0 %v166
    %738 = vmatprep.subr.mxu0 %v169
    %739 = vmatpush1.msra.mxu0 %v168
    %740 = vmatprep.subr.mxu0 %v171
    %741 = vmatpush1.msra.mxu0 %v170
    %742 = vmatprep.subr.mxu0 %v173
    %743 = vmatpush1.msra.mxu0 %v172
    %744 = vmatprep.subr.mxu0 %v175
    %745 = vmatpush1.msra.mxu0 %v174
    %746 = vmatprep.subr.mxu0 %v177
    %747 = vmatpush1.msra.mxu0 %v176
    %748 = vmatprep.subr.mxu0 %v179
    %749 = vmatpush1.msra.mxu0 %v178
    %750 = vmatprep.subr.mxu0 0.0
    %751 = vmatpush1.msra.mxu0 0.0
    %752 = vmatprep.subr.mxu0 0.0
    %753 = vmatpush1.msra.mxu0 0.0
    %754 = vmatprep.subr.mxu0 0.0
    %755 = vmatpush1.msra.mxu0 0.0
    %756 = vmatprep.subr.mxu0 0.0
    %757 = vmatpush1.msra.mxu0 0.0
    %758 = vmatprep.subr.mxu0 0.0
    %759 = vmatpush1.msra.mxu0 0.0
    %760 = vmatprep.subr.mxu0 0.0
    %761 = vmatpush1.msra.mxu0 0.0
    %762 = vmatprep.subr.mxu0 0.0
    %763 = vmatpush1.msra.mxu0 0.0
    %764 = vmatprep.subr.mxu0 0.0
    %765 = vmatpush1.msra.mxu0 0.0
    %766 = vmatprep.subr.mxu0 0.0
    %767 = vmatpush1.msra.mxu0 0.0
    %768 = vmatprep.subr.mxu0 0.0
    %769 = vmatpush1.msra.mxu0 0.0
    %770 = vmatprep.subr.mxu0 0.0
    %771 = vmatpush1.msra.mxu0 0.0
    %772 = vmatprep.subr.mxu0 0.0
    %773 = vmatpush1.msra.mxu0 0.0
    %774 = vmatprep.subr.mxu0 0.0
    %775 = vmatpush1.msra.mxu0 0.0
    %776 = vmatprep.subr.mxu0 0.0
    %777 = vmatpush1.msra.mxu0 0.0
    %778 = vmatprep.subr.mxu0 0.0
    %779 = vmatpush1.msra.mxu0 0.0
    %780 = vmatprep.subr.mxu0 0.0
    %781 = vmatpush1.msra.mxu0 0.0
    %782 = vmatprep.subr.mxu0 0.0
    %783 = vmatpush1.msra.mxu0 0.0
    %784 = vmatprep.subr.mxu0 0.0
    %785 = vmatpush1.msra.mxu0 0.0
    %786 = vmatprep.subr.mxu0 0.0
    %787 = vmatpush1.msra.mxu0 0.0
    %788 = vmatprep.subr.mxu0 0.0
    %789 = vmatpush1.msra.mxu0 0.0
    %790 = vmatprep.subr.mxu0 0.0
    %791 = vmatpush1.msra.mxu0 0.0
    %792 = vmatprep.subr.mxu0 0.0
    %793 = vmatpush1.msra.mxu0 0.0
    %794 = vmatprep.subr.mxu0 0.0
    %795 = vmatpush1.msra.mxu0 0.0
    %796 = vmatprep.subr.mxu0 0.0
    %797 = vmatpush1.msra.mxu0 0.0
    %798 = vmatprep.mubr.f32.mxu0 0.0
    %799 = vmatmul.mubr.f32.gmra.mrb[0].mxu0 %v732
    %v800 = vpop.f32.mrb[0].mxu0
    %v801 = vadd.f32 0.0, %v800
    %v802 = vpop.f32.mrb[0].mxu0
    %v803 = vadd.f32 0.0, %v802
    %804 = vdwg.mxu0
    %v805 = vrot.slane %v161, 3
    %v807 = vadd.f32 %v801, %v805
    %v808 = vmul.f32 %v807, %v191
    %v809 = vtanh.pop %v808
    %v810 = vmul.f32 %v809, %v191
    %v811 = vadd.f32 %v810, %v192
    %v812 = vmul.f32 %v811, %v605
    %814 = vrot.lane.b32.xlu0 %v811, 64
    %v815 = vpop.permute.xlu0 %814
    %v817 = vmul.f32 %v811, %v815
    %819 = vrot.lane.b32.xlu0 %v817, 32
    %v820 = vpop.permute.xlu0 %819
    %v822 = vadd.f32 %v812, %v820
    %v823 = vtanh.pop %v822
    %825 = vrot.lane.b32.xlu0 %v823, 64
    %v826 = vpop.permute.xlu0 %825
    %v828 = vmul.f32 %v811, %v826
    %v829 = vadd.f32 %v803, %v180
    %v830 = vmul.f32 %v829, %v191
    %v831 = vtanh.pop %v830
    %v832 = vmul.f32 %v831, %v191
    %v833 = vadd.f32 %v832, %v192
    %v834 = vmul.f32 %v833, %v627
    %836 = vrot.lane.b32.xlu0 %v833, 64
    %v837 = vpop.permute.xlu0 %836
    %v839 = vmul.f32 %v833, %v837
    %841 = vrot.lane.b32.xlu0 %v839, 32
    %v842 = vpop.permute.xlu0 %841
    %v844 = vadd.f32 %v834, %v842
    %v845 = vtanh.pop %v844
    %847 = vrot.lane.b32.xlu0 %v845, 64
    %v848 = vpop.permute.xlu0 %847
    %v850 = vmul.f32 %v833, %v848
    %852 = vrot.lane.b32.xlu0 %v850, 32
    %v853 = vpop.permute.xlu0 %852
    %v854 = vsel %vm293, %v853, 0
    %856 = vmatprep.subr.mxu0 0.0
    %857 = vmatpush1.msra.mxu0 %v181
    %858 = vmatprep.subr.mxu0 0.0
    %859 = vmatpush1.msra.mxu0 %v182
    %860 = vmatprep.subr.mxu0 0.0
    %861 = vmatpush1.msra.mxu0 %v183
    %862 = vmatprep.subr.mxu0 0.0
    %863 = vmatpush1.msra.mxu0 %v184
    %864 = vmatprep.subr.mxu0 0.0
    %865 = vmatpush1.msra.mxu0 0.0
    %866 = vmatprep.subr.mxu0 0.0
    %867 = vmatpush1.msra.mxu0 0.0
    %868 = vmatprep.subr.mxu0 0.0
    %869 = vmatpush1.msra.mxu0 0.0
    %870 = vmatprep.subr.mxu0 0.0
    %871 = vmatpush1.msra.mxu0 0.0
    %872 = vmatprep.subr.mxu0 0.0
    %873 = vmatpush1.msra.mxu0 0.0
    %874 = vmatprep.subr.mxu0 0.0
    %875 = vmatpush1.msra.mxu0 0.0
    %876 = vmatprep.subr.mxu0 0.0
    %877 = vmatpush1.msra.mxu0 0.0
    %878 = vmatprep.subr.mxu0 0.0
    %879 = vmatpush1.msra.mxu0 0.0
    %880 = vmatprep.subr.mxu0 0.0
    %881 = vmatpush1.msra.mxu0 0.0
    %882 = vmatprep.subr.mxu0 0.0
    %883 = vmatpush1.msra.mxu0 0.0
    %884 = vmatprep.subr.mxu0 0.0
    %885 = vmatpush1.msra.mxu0 0.0
    %886 = vmatprep.subr.mxu0 0.0
    %887 = vmatpush1.msra.mxu0 0.0
    %888 = vmatprep.subr.mxu0 0.0
    %889 = vmatpush1.msra.mxu0 0.0
    %890 = vmatprep.subr.mxu0 0.0
    %891 = vmatpush1.msra.mxu0 0.0
    %892 = vmatprep.subr.mxu0 0.0
    %893 = vmatpush1.msra.mxu0 0.0
    %894 = vmatprep.subr.mxu0 0.0
    %895 = vmatpush1.msra.mxu0 0.0
    %896 = vmatprep.subr.mxu0 0.0
    %897 = vmatpush1.msra.mxu0 0.0
    %898 = vmatprep.subr.mxu0 0.0
    %899 = vmatpush1.msra.mxu0 0.0
    %900 = vmatprep.subr.mxu0 0.0
    %901 = vmatpush1.msra.mxu0 0.0
    %902 = vmatprep.subr.mxu0 0.0
    %903 = vmatpush1.msra.mxu0 0.0
    %904 = vmatprep.subr.mxu0 0.0
    %905 = vmatpush1.msra.mxu0 0.0
    %906 = vmatprep.subr.mxu0 0.0
    %907 = vmatpush1.msra.mxu0 0.0
    %908 = vmatprep.subr.mxu0 0.0
    %909 = vmatpush1.msra.mxu0 0.0
    %910 = vmatprep.subr.mxu0 0.0
    %911 = vmatpush1.msra.mxu0 0.0
    %912 = vmatprep.subr.mxu0 0.0
    %913 = vmatpush1.msra.mxu0 0.0
    %914 = vmatprep.subr.mxu0 0.0
    %915 = vmatpush1.msra.mxu0 0.0
    %916 = vmatprep.subr.mxu0 0.0
    %917 = vmatpush1.msra.mxu0 0.0
    %918 = vmatprep.subr.mxu0 0.0
    %919 = vmatpush1.msra.mxu0 0.0
    %920 = vmatprep.mubr.f32.mxu0 0.0
    %921 = vmatmul.mubr.f32.gmra.mrb[0].mxu0 %v854
    %v922 = vpop.f32.mrb[0].mxu0
    %v923 = vadd.f32 %v185, %v922
    %v924 = vpop.f32.mrb[0].mxu0
    %925 = vdwg.mxu0
    %v926 = vsel %vm491, %v923, -inf
    %927 = vmax.xlane.f32.xlu0 %v926
    %v928 = vpop.xlane.xlu0 %927
    %v929 = vsub.f32 %v923, %v928
    %v930 = vmul.f32 %v929, 1.442695
    %v931 = vpow.pop %v930
    %v932 = vsel %vm491, %v931, 0.0
    %933 = vadd.xlane.f32.xlu0 %v932
    %v934 = vpop.xlane.xlu0 %933
    %v935 = vlog2.pop %v934
    %v936 = vmul.f32 %v935, 0.6931472
    %v937 = vadd.f32 %v936, %v928
    %v938 = vsub.f32 %v923, %v937
    %939 = vst [vmem:[#allocation10 + $0x2] sm:$0x1] %v938
    %941 = vrot.lane.b32.xlu0 %v828, 32
    %v942 = vpop.permute.xlu0 %941
    %944 = vrot.lane.b32.xlu0 %v850, 64
    %v945 = vpop.permute.xlu0 %944
    %v947 = vsel %vm293, %v942, %v945
    %v949 = vsel %vm193, %v947, 0
    %951 = vmatprep.subr.mxu0 %v165
    %952 = vmatpush1.msra.mxu0 %v164
    %953 = vmatprep.subr.mxu0 %v167
    %954 = vmatpush1.msra.mxu0 %v166
    %955 = vmatprep.subr.mxu0 %v169
    %956 = vmatpush1.msra.mxu0 %v168
    %957 = vmatprep.subr.mxu0 %v171
    %958 = vmatpush1.msra.mxu0 %v170
    %959 = vmatprep.subr.mxu0 %v173
    %960 = vmatpush1.msra.mxu0 %v172
    %961 = vmatprep.subr.mxu0 %v175
    %962 = vmatpush1.msra.mxu0 %v174
    %963 = vmatprep.subr.mxu0 %v177
    %964 = vmatpush1.msra.mxu0 %v176
    %965 = vmatprep.subr.mxu0 %v179
    %966 = vmatpush1.msra.mxu0 %v178
    %967 = vmatprep.subr.mxu0 0.0
    %968 = vmatpush1.msra.mxu0 0.0
    %969 = vmatprep.subr.mxu0 0.0
    %970 = vmatpush1.msra.mxu0 0.0
    %971 = vmatprep.subr.mxu0 0.0
    %972 = vmatpush1.msra.mxu0 0.0
    %973 = vmatprep.subr.mxu0 0.0
    %974 = vmatpush1.msra.mxu0 0.0
    %975 = vmatprep.subr.mxu0 0.0
    %976 = vmatpush1.msra.mxu0 0.0
    %977 = vmatprep.subr.mxu0 0.0
    %978 = vmatpush1.msra.mxu0 0.0
    %979 = vmatprep.subr.mxu0 0.0
    %980 = vmatpush1.msra.mxu0 0.0
    %981 = vmatprep.subr.mxu0 0.0
    %982 = vmatpush1.msra.mxu0 0.0
    %983 = vmatprep.subr.mxu0 0.0
    %984 = vmatpush1.msra.mxu0 0.0
    %985 = vmatprep.subr.mxu0 0.0
    %986 = vmatpush1.msra.mxu0 0.0
    %987 = vmatprep.subr.mxu0 0.0
    %988 = vmatpush1.msra.mxu0 0.0
    %989 = vmatprep.subr.mxu0 0.0
    %990 = vmatpush1.msra.mxu0 0.0
    %991 = vmatprep.subr.mxu0 0.0
    %992 = vmatpush1.msra.mxu0 0.0
    %993 = vmatprep.subr.mxu0 0.0
    %994 = vmatpush1.msra.mxu0 0.0
    %995 = vmatprep.subr.mxu0 0.0
    %996 = vmatpush1.msra.mxu0 0.0
    %997 = vmatprep.subr.mxu0 0.0
    %998 = vmatpush1.msra.mxu0 0.0
    %999 = vmatprep.subr.mxu0 0.0
    %1000 = vmatpush1.msra.mxu0 0.0
    %1001 = vmatprep.subr.mxu0 0.0
    %1002 = vmatpush1.msra.mxu0 0.0
    %1003 = vmatprep.subr.mxu0 0.0
    %1004 = vmatpush1.msra.mxu0 0.0
    %1005 = vmatprep.subr.mxu0 0.0
    %1006 = vmatpush1.msra.mxu0 0.0
    %1007 = vmatprep.subr.mxu0 0.0
    %1008 = vmatpush1.msra.mxu0 0.0
    %1009 = vmatprep.subr.mxu0 0.0
    %1010 = vmatpush1.msra.mxu0 0.0
    %1011 = vmatprep.subr.mxu0 0.0
    %1012 = vmatpush1.msra.mxu0 0.0
    %1013 = vmatprep.subr.mxu0 0.0
    %1014 = vmatpush1.msra.mxu0 0.0
    %1015 = vmatprep.mubr.f32.mxu0 0.0
    %1016 = vmatmul.mubr.f32.gmra.mrb[0].mxu0 %v949
    %v1017 = vpop.f32.mrb[0].mxu0
    %v1018 = vadd.f32 0.0, %v1017
    %v1019 = vpop.f32.mrb[0].mxu0
    %v1020 = vadd.f32 0.0, %v1019
    %1021 = vdwg.mxu0
    %v1022 = vrot.slane %v161, 4
    %v1024 = vadd.f32 %v1018, %v1022
    %v1025 = vmul.f32 %v1024, %v191
    %v1026 = vtanh.pop %v1025
    %v1027 = vmul.f32 %v1026, %v191
    %v1028 = vadd.f32 %v1027, %v192
    %v1029 = vmul.f32 %v1028, %v822
    %1031 = vrot.lane.b32.xlu0 %v1028, 64
    %v1032 = vpop.permute.xlu0 %1031
    %v1034 = vmul.f32 %v1028, %v1032
    %1036 = vrot.lane.b32.xlu0 %v1034, 32
    %v1037 = vpop.permute.xlu0 %1036
    %v1039 = vadd.f32 %v1029, %v1037
    %v1040 = vtanh.pop %v1039
    %1042 = vrot.lane.b32.xlu0 %v1040, 64
    %v1043 = vpop.permute.xlu0 %1042
    %v1045 = vmul.f32 %v1028, %v1043
    %v1046 = vadd.f32 %v1020, %v180
    %v1047 = vmul.f32 %v1046, %v191
    %v1048 = vtanh.pop %v1047
    %v1049 = vmul.f32 %v1048, %v191
    %v1050 = vadd.f32 %v1049, %v192
    %v1051 = vmul.f32 %v1050, %v844
    %1053 = vrot.lane.b32.xlu0 %v1050, 64
    %v1054 = vpop.permute.xlu0 %1053
    %v1056 = vmul.f32 %v1050, %v1054
    %1058 = vrot.lane.b32.xlu0 %v1056, 32
    %v1059 = vpop.permute.xlu0 %1058
    %v1061 = vadd.f32 %v1051, %v1059
    %v1062 = vtanh.pop %v1061
    %1064 = vrot.lane.b32.xlu0 %v1062, 64
    %v1065 = vpop.permute.xlu0 %1064
    %v1067 = vmul.f32 %v1050, %v1065
    %1069 = vrot.lane.b32.xlu0 %v1067, 32
    %v1070 = vpop.permute.xlu0 %1069
    %v1071 = vsel %vm293, %v1070, 0
    %1073 = vmatprep.subr.mxu0 0.0
    %1074 = vmatpush1.msra.mxu0 %v181
    %1075 = vmatprep.subr.mxu0 0.0
    %1076 = vmatpush1.msra.mxu0 %v182
    %1077 = vmatprep.subr.mxu0 0.0
    %1078 = vmatpush1.msra.mxu0 %v183
    %1079 = vmatprep.subr.mxu0 0.0
    %1080 = vmatpush1.msra.mxu0 %v184
    %1081 = vmatprep.subr.mxu0 0.0
    %1082 = vmatpush1.msra.mxu0 0.0
    %1083 = vmatprep.subr.mxu0 0.0
    %1084 = vmatpush1.msra.mxu0 0.0
    %1085 = vmatprep.subr.mxu0 0.0
    %1086 = vmatpush1.msra.mxu0 0.0
    %1087 = vmatprep.subr.mxu0 0.0
    %1088 = vmatpush1.msra.mxu0 0.0
    %1089 = vmatprep.subr.mxu0 0.0
    %1090 = vmatpush1.msra.mxu0 0.0
    %1091 = vmatprep.subr.mxu0 0.0
    %1092 = vmatpush1.msra.mxu0 0.0
    %1093 = vmatprep.subr.mxu0 0.0
    %1094 = vmatpush1.msra.mxu0 0.0
    %1095 = vmatprep.subr.mxu0 0.0
    %1096 = vmatpush1.msra.mxu0 0.0
    %1097 = vmatprep.subr.mxu0 0.0
    %1098 = vmatpush1.msra.mxu0 0.0
    %1099 = vmatprep.subr.mxu0 0.0
    %1100 = vmatpush1.msra.mxu0 0.0
    %1101 = vmatprep.subr.mxu0 0.0
    %1102 = vmatpush1.msra.mxu0 0.0
    %1103 = vmatprep.subr.mxu0 0.0
    %1104 = vmatpush1.msra.mxu0 0.0
    %1105 = vmatprep.subr.mxu0 0.0
    %1106 = vmatpush1.msra.mxu0 0.0
    %1107 = vmatprep.subr.mxu0 0.0
    %1108 = vmatpush1.msra.mxu0 0.0
    %1109 = vmatprep.subr.mxu0 0.0
    %1110 = vmatpush1.msra.mxu0 0.0
    %1111 = vmatprep.subr.mxu0 0.0
    %1112 = vmatpush1.msra.mxu0 0.0
    %1113 = vmatprep.subr.mxu0 0.0
    %1114 = vmatpush1.msra.mxu0 0.0
    %1115 = vmatprep.subr.mxu0 0.0
    %1116 = vmatpush1.msra.mxu0 0.0
    %1117 = vmatprep.subr.mxu0 0.0
    %1118 = vmatpush1.msra.mxu0 0.0
    %1119 = vmatprep.subr.mxu0 0.0
    %1120 = vmatpush1.msra.mxu0 0.0
    %1121 = vmatprep.subr.mxu0 0.0
    %1122 = vmatpush1.msra.mxu0 0.0
    %1123 = vmatprep.subr.mxu0 0.0
    %1124 = vmatpush1.msra.mxu0 0.0
    %1125 = vmatprep.subr.mxu0 0.0
    %1126 = vmatpush1.msra.mxu0 0.0
    %1127 = vmatprep.subr.mxu0 0.0
    %1128 = vmatpush1.msra.mxu0 0.0
    %1129 = vmatprep.subr.mxu0 0.0
    %1130 = vmatpush1.msra.mxu0 0.0
    %1131 = vmatprep.subr.mxu0 0.0
    %1132 = vmatpush1.msra.mxu0 0.0
    %1133 = vmatprep.subr.mxu0 0.0
    %1134 = vmatpush1.msra.mxu0 0.0
    %1135 = vmatprep.subr.mxu0 0.0
    %1136 = vmatpush1.msra.mxu0 0.0
    %1137 = vmatprep.mubr.f32.mxu0 0.0
    %1138 = vmatmul.mubr.f32.gmra.mrb[0].mxu0 %v1071
    %v1139 = vpop.f32.mrb[0].mxu0
    %v1140 = vadd.f32 %v185, %v1139
    %v1141 = vpop.f32.mrb[0].mxu0
    %1142 = vdwg.mxu0
    %v1143 = vsel %vm491, %v1140, -inf
    %1144 = vmax.xlane.f32.xlu0 %v1143
    %v1145 = vpop.xlane.xlu0 %1144
    %v1146 = vsub.f32 %v1140, %v1145
    %v1147 = vmul.f32 %v1146, 1.442695
    %v1148 = vpow.pop %v1147
    %v1149 = vsel %vm491, %v1148, 0.0
    %1150 = vadd.xlane.f32.xlu0 %v1149
    %v1151 = vpop.xlane.xlu0 %1150
    %v1152 = vlog2.pop %v1151
    %v1153 = vmul.f32 %v1152, 0.6931472
    %v1154 = vadd.f32 %v1153, %v1145
    %v1155 = vsub.f32 %v1140, %v1154
    %1156 = vst [vmem:[#allocation10 + $0x3] sm:$0x1] %v1155
    %1158 = vrot.lane.b32.xlu0 %v1045, 32
    %v1159 = vpop.permute.xlu0 %1158
    %1161 = vrot.lane.b32.xlu0 %v1067, 64
    %v1162 = vpop.permute.xlu0 %1161
    %v1164 = vsel %vm293, %v1159, %v1162
    %v1166 = vsel %vm193, %v1164, 0
    %1168 = vmatprep.subr.mxu0 %v165
    %1169 = vmatpush1.msra.mxu0 %v164
    %1170 = vmatprep.subr.mxu0 %v167
    %1171 = vmatpush1.msra.mxu0 %v166
    %1172 = vmatprep.subr.mxu0 %v169
    %1173 = vmatpush1.msra.mxu0 %v168
    %1174 = vmatprep.subr.mxu0 %v171
    %1175 = vmatpush1.msra.mxu0 %v170
    %1176 = vmatprep.subr.mxu0 %v173
    %1177 = vmatpush1.msra.mxu0 %v172
    %1178 = vmatprep.subr.mxu0 %v175
    %1179 = vmatpush1.msra.mxu0 %v174
    %1180 = vmatprep.subr.mxu0 %v177
    %1181 = vmatpush1.msra.mxu0 %v176
    %1182 = vmatprep.subr.mxu0 %v179
    %1183 = vmatpush1.msra.mxu0 %v178
    %1184 = vmatprep.subr.mxu0 0.0
    %1185 = vmatpush1.msra.mxu0 0.0
    %1186 = vmatprep.subr.mxu0 0.0
    %1187 = vmatpush1.msra.mxu0 0.0
    %1188 = vmatprep.subr.mxu0 0.0
    %1189 = vmatpush1.msra.mxu0 0.0
    %1190 = vmatprep.subr.mxu0 0.0
    %1191 = vmatpush1.msra.mxu0 0.0
    %1192 = vmatprep.subr.mxu0 0.0
    %1193 = vmatpush1.msra.mxu0 0.0
    %1194 = vmatprep.subr.mxu0 0.0
    %1195 = vmatpush1.msra.mxu0 0.0
    %1196 = vmatprep.subr.mxu0 0.0
    %1197 = vmatpush1.msra.mxu0 0.0
    %1198 = vmatprep.subr.mxu0 0.0
    %1199 = vmatpush1.msra.mxu0 0.0
    %1200 = vmatprep.subr.mxu0 0.0
    %1201 = vmatpush1.msra.mxu0 0.0
    %1202 = vmatprep.subr.mxu0 0.0
    %1203 = vmatpush1.msra.mxu0 0.0
    %1204 = vmatprep.subr.mxu0 0.0
    %1205 = vmatpush1.msra.mxu0 0.0
    %1206 = vmatprep.subr.mxu0 0.0
    %1207 = vmatpush1.msra.mxu0 0.0
    %1208 = vmatprep.subr.mxu0 0.0
    %1209 = vmatpush1.msra.mxu0 0.0
    %1210 = vmatprep.subr.mxu0 0.0
    %1211 = vmatpush1.msra.mxu0 0.0
    %1212 = vmatprep.subr.mxu0 0.0
    %1213 = vmatpush1.msra.mxu0 0.0
    %1214 = vmatprep.subr.mxu0 0.0
    %1215 = vmatpush1.msra.mxu0 0.0
    %1216 = vmatprep.subr.mxu0 0.0
    %1217 = vmatpush1.msra.mxu0 0.0
    %1218 = vmatprep.subr.mxu0 0.0
    %1219 = vmatpush1.msra.mxu0 0.0
    %1220 = vmatprep.subr.mxu0 0.0
    %1221 = vmatpush1.msra.mxu0 0.0
    %1222 = vmatprep.subr.mxu0 0.0
    %1223 = vmatpush1.msra.mxu0 0.0
    %1224 = vmatprep.subr.mxu0 0.0
    %1225 = vmatpush1.msra.mxu0 0.0
    %1226 = vmatprep.subr.mxu0 0.0
    %1227 = vmatpush1.msra.mxu0 0.0
    %1228 = vmatprep.subr.mxu0 0.0
    %1229 = vmatpush1.msra.mxu0 0.0
    %1230 = vmatprep.subr.mxu0 0.0
    %1231 = vmatpush1.msra.mxu0 0.0
    %1232 = vmatprep.mubr.f32.mxu0 0.0
    %1233 = vmatmul.mubr.f32.gmra.mrb[0].mxu0 %v1166
    %v1234 = vpop.f32.mrb[0].mxu0
    %v1235 = vadd.f32 0.0, %v1234
    %v1236 = vpop.f32.mrb[0].mxu0
    %v1237 = vadd.f32 0.0, %v1236
    %1238 = vdwg.mxu0
    %v1239 = vrot.slane %v161, 5
    %v1241 = vadd.f32 %v1235, %v1239
    %v1242 = vmul.f32 %v1241, %v191
    %v1243 = vtanh.pop %v1242
    %v1244 = vmul.f32 %v1243, %v191
    %v1245 = vadd.f32 %v1244, %v192
    %v1246 = vmul.f32 %v1245, %v1039
    %1248 = vrot.lane.b32.xlu0 %v1245, 64
    %v1249 = vpop.permute.xlu0 %1248
    %v1251 = vmul.f32 %v1245, %v1249
    %1253 = vrot.lane.b32.xlu0 %v1251, 32
    %v1254 = vpop.permute.xlu0 %1253
    %v1256 = vadd.f32 %v1246, %v1254
    %v1257 = vtanh.pop %v1256
    %1259 = vrot.lane.b32.xlu0 %v1257, 64
    %v1260 = vpop.permute.xlu0 %1259
    %v1262 = vmul.f32 %v1245, %v1260
    %v1263 = vadd.f32 %v1237, %v180
    %v1264 = vmul.f32 %v1263, %v191
    %v1265 = vtanh.pop %v1264
    %v1266 = vmul.f32 %v1265, %v191
    %v1267 = vadd.f32 %v1266, %v192
    %v1268 = vmul.f32 %v1267, %v1061
    %1270 = vrot.lane.b32.xlu0 %v1267, 64
    %v1271 = vpop.permute.xlu0 %1270
    %v1273 = vmul.f32 %v1267, %v1271
    %1275 = vrot.lane.b32.xlu0 %v1273, 32
    %v1276 = vpop.permute.xlu0 %1275
    %v1278 = vadd.f32 %v1268, %v1276
    %v1279 = vtanh.pop %v1278
    %1281 = vrot.lane.b32.xlu0 %v1279, 64
    %v1282 = vpop.permute.xlu0 %1281
    %v1284 = vmul.f32 %v1267, %v1282
    %1286 = vrot.lane.b32.xlu0 %v1284, 32
    %v1287 = vpop.permute.xlu0 %1286
    %v1288 = vsel %vm293, %v1287, 0
    %1290 = vmatprep.subr.mxu0 0.0
    %1291 = vmatpush1.msra.mxu0 %v181
    %1292 = vmatprep.subr.mxu0 0.0
    %1293 = vmatpush1.msra.mxu0 %v182
    %1294 = vmatprep.subr.mxu0 0.0
    %1295 = vmatpush1.msra.mxu0 %v183
    %1296 = vmatprep.subr.mxu0 0.0
    %1297 = vmatpush1.msra.mxu0 %v184
    %1298 = vmatprep.subr.mxu0 0.0
    %1299 = vmatpush1.msra.mxu0 0.0
    %1300 = vmatprep.subr.mxu0 0.0
    %1301 = vmatpush1.msra.mxu0 0.0
    %1302 = vmatprep.subr.mxu0 0.0
    %1303 = vmatpush1.msra.mxu0 0.0
    %1304 = vmatprep.subr.mxu0 0.0
    %1305 = vmatpush1.msra.mxu0 0.0
    %1306 = vmatprep.subr.mxu0 0.0
    %1307 = vmatpush1.msra.mxu0 0.0
    %1308 = vmatprep.subr.mxu0 0.0
    %1309 = vmatpush1.msra.mxu0 0.0
    %1310 = vmatprep.subr.mxu0 0.0
    %1311 = vmatpush1.msra.mxu0 0.0
    %1312 = vmatprep.subr.mxu0 0.0
    %1313 = vmatpush1.msra.mxu0 0.0
    %1314 = vmatprep.subr.mxu0 0.0
    %1315 = vmatpush1.msra.mxu0 0.0
    %1316 = vmatprep.subr.mxu0 0.0
    %1317 = vmatpush1.msra.mxu0 0.0
    %1318 = vmatprep.subr.mxu0 0.0
    %1319 = vmatpush1.msra.mxu0 0.0
    %1320 = vmatprep.subr.mxu0 0.0
    %1321 = vmatpush1.msra.mxu0 0.0
    %1322 = vmatprep.subr.mxu0 0.0
    %1323 = vmatpush1.msra.mxu0 0.0
    %1324 = vmatprep.subr.mxu0 0.0
    %1325 = vmatpush1.msra.mxu0 0.0
    %1326 = vmatprep.subr.mxu0 0.0
    %1327 = vmatpush1.msra.mxu0 0.0
    %1328 = vmatprep.subr.mxu0 0.0
    %1329 = vmatpush1.msra.mxu0 0.0
    %1330 = vmatprep.subr.mxu0 0.0
    %1331 = vmatpush1.msra.mxu0 0.0
    %1332 = vmatprep.subr.mxu0 0.0
    %1333 = vmatpush1.msra.mxu0 0.0
    %1334 = vmatprep.subr.mxu0 0.0
    %1335 = vmatpush1.msra.mxu0 0.0
    %1336 = vmatprep.subr.mxu0 0.0
    %1337 = vmatpush1.msra.mxu0 0.0
    %1338 = vmatprep.subr.mxu0 0.0
    %1339 = vmatpush1.msra.mxu0 0.0
    %1340 = vmatprep.subr.mxu0 0.0
    %1341 = vmatpush1.msra.mxu0 0.0
    %1342 = vmatprep.subr.mxu0 0.0
    %1343 = vmatpush1.msra.mxu0 0.0
    %1344 = vmatprep.subr.mxu0 0.0
    %1345 = vmatpush1.msra.mxu0 0.0
    %1346 = vmatprep.subr.mxu0 0.0
    %1347 = vmatpush1.msra.mxu0 0.0
    %1348 = vmatprep.subr.mxu0 0.0
    %1349 = vmatpush1.msra.mxu0 0.0
    %1350 = vmatprep.subr.mxu0 0.0
    %1351 = vmatpush1.msra.mxu0 0.0
    %1352 = vmatprep.subr.mxu0 0.0
    %1353 = vmatpush1.msra.mxu0 0.0
    %1354 = vmatprep.mubr.f32.mxu0 0.0
    %1355 = vmatmul.mubr.f32.gmra.mrb[0].mxu0 %v1288
    %v1356 = vpop.f32.mrb[0].mxu0
    %v1357 = vadd.f32 %v185, %v1356
    %v1358 = vpop.f32.mrb[0].mxu0
    %1359 = vdwg.mxu0
    %v1360 = vsel %vm491, %v1357, -inf
    %1361 = vmax.xlane.f32.xlu0 %v1360
    %v1362 = vpop.xlane.xlu0 %1361
    %v1363 = vsub.f32 %v1357, %v1362
    %v1364 = vmul.f32 %v1363, 1.442695
    %v1365 = vpow.pop %v1364
    %v1366 = vsel %vm491, %v1365, 0.0
    %1367 = vadd.xlane.f32.xlu0 %v1366
    %v1368 = vpop.xlane.xlu0 %1367
    %v1369 = vlog2.pop %v1368
    %v1370 = vmul.f32 %v1369, 0.6931472
    %v1371 = vadd.f32 %v1370, %v1362
    %v1372 = vsub.f32 %v1357, %v1371
    %1373 = vst [vmem:[#allocation10 + $0x4] sm:$0x1] %v1372
    %1375 = vrot.lane.b32.xlu0 %v1262, 32
    %v1376 = vpop.permute.xlu0 %1375
    %1378 = vrot.lane.b32.xlu0 %v1284, 64
    %v1379 = vpop.permute.xlu0 %1378
    %v1381 = vsel %vm293, %v1376, %v1379
    %v1383 = vsel %vm193, %v1381, 0
    %1385 = vmatprep.subr.mxu0 %v165
    %1386 = vmatpush1.msra.mxu0 %v164
    %1387 = vmatprep.subr.mxu0 %v167
    %1388 = vmatpush1.msra.mxu0 %v166
    %1389 = vmatprep.subr.mxu0 %v169
    %1390 = vmatpush1.msra.mxu0 %v168
    %1391 = vmatprep.subr.mxu0 %v171
    %1392 = vmatpush1.msra.mxu0 %v170
    %1393 = vmatprep.subr.mxu0 %v173
    %1394 = vmatpush1.msra.mxu0 %v172
    %1395 = vmatprep.subr.mxu0 %v175
    %1396 = vmatpush1.msra.mxu0 %v174
    %1397 = vmatprep.subr.mxu0 %v177
    %1398 = vmatpush1.msra.mxu0 %v176
    %1399 = vmatprep.subr.mxu0 %v179
    %1400 = vmatpush1.msra.mxu0 %v178
    %1401 = vmatprep.subr.mxu0 0.0
    %1402 = vmatpush1.msra.mxu0 0.0
    %1403 = vmatprep.subr.mxu0 0.0
    %1404 = vmatpush1.msra.mxu0 0.0
    %1405 = vmatprep.subr.mxu0 0.0
    %1406 = vmatpush1.msra.mxu0 0.0
    %1407 = vmatprep.subr.mxu0 0.0
    %1408 = vmatpush1.msra.mxu0 0.0
    %1409 = vmatprep.subr.mxu0 0.0
    %1410 = vmatpush1.msra.mxu0 0.0
    %1411 = vmatprep.subr.mxu0 0.0
    %1412 = vmatpush1.msra.mxu0 0.0
    %1413 = vmatprep.subr.mxu0 0.0
    %1414 = vmatpush1.msra.mxu0 0.0
    %1415 = vmatprep.subr.mxu0 0.0
    %1416 = vmatpush1.msra.mxu0 0.0
    %1417 = vmatprep.subr.mxu0 0.0
    %1418 = vmatpush1.msra.mxu0 0.0
    %1419 = vmatprep.subr.mxu0 0.0
    %1420 = vmatpush1.msra.mxu0 0.0
    %1421 = vmatprep.subr.mxu0 0.0
    %1422 = vmatpush1.msra.mxu0 0.0
    %1423 = vmatprep.subr.mxu0 0.0
    %1424 = vmatpush1.msra.mxu0 0.0
    %1425 = vmatprep.subr.mxu0 0.0
    %1426 = vmatpush1.msra.mxu0 0.0
    %1427 = vmatprep.subr.mxu0 0.0
    %1428 = vmatpush1.msra.mxu0 0.0
    %1429 = vmatprep.subr.mxu0 0.0
    %1430 = vmatpush1.msra.mxu0 0.0
    %1431 = vmatprep.subr.mxu0 0.0
    %1432 = vmatpush1.msra.mxu0 0.0
    %1433 = vmatprep.subr.mxu0 0.0
    %1434 = vmatpush1.msra.mxu0 0.0
    %1435 = vmatprep.subr.mxu0 0.0
    %1436 = vmatpush1.msra.mxu0 0.0
    %1437 = vmatprep.subr.mxu0 0.0
    %1438 = vmatpush1.msra.mxu0 0.0
    %1439 = vmatprep.subr.mxu0 0.0
    %1440 = vmatpush1.msra.mxu0 0.0
    %1441 = vmatprep.subr.mxu0 0.0
    %1442 = vmatpush1.msra.mxu0 0.0
    %1443 = vmatprep.subr.mxu0 0.0
    %1444 = vmatpush1.msra.mxu0 0.0
    %1445 = vmatprep.subr.mxu0 0.0
    %1446 = vmatpush1.msra.mxu0 0.0
    %1447 = vmatprep.subr.mxu0 0.0
    %1448 = vmatpush1.msra.mxu0 0.0
    %1449 = vmatprep.mubr.f32.mxu0 0.0
    %1450 = vmatmul.mubr.f32.gmra.mrb[0].mxu0 %v1383
    %v1451 = vpop.f32.mrb[0].mxu0
    %v1452 = vadd.f32 0.0, %v1451
    %v1453 = vpop.f32.mrb[0].mxu0
    %v1454 = vadd.f32 0.0, %v1453
    %1455 = vdwg.mxu0
    %v1456 = vrot.slane %v161, 6
    %v1458 = vadd.f32 %v1452, %v1456
    %v1459 = vmul.f32 %v1458, %v191
    %v1460 = vtanh.pop %v1459
    %v1461 = vmul.f32 %v1460, %v191
    %v1462 = vadd.f32 %v1461, %v192
    %v1463 = vmul.f32 %v1462, %v1256
    %1465 = vrot.lane.b32.xlu0 %v1462, 64
    %v1466 = vpop.permute.xlu0 %1465
    %v1468 = vmul.f32 %v1462, %v1466
    %1470 = vrot.lane.b32.xlu0 %v1468, 32
    %v1471 = vpop.permute.xlu0 %1470
    %v1473 = vadd.f32 %v1463, %v1471
    %v1474 = vtanh.pop %v1473
    %1476 = vrot.lane.b32.xlu0 %v1474, 64
    %v1477 = vpop.permute.xlu0 %1476
    %v1479 = vmul.f32 %v1462, %v1477
    %v1480 = vadd.f32 %v1454, %v180
    %v1481 = vmul.f32 %v1480, %v191
    %v1482 = vtanh.pop %v1481
    %v1483 = vmul.f32 %v1482, %v191
    %v1484 = vadd.f32 %v1483, %v192
    %v1485 = vmul.f32 %v1484, %v1278
    %1487 = vrot.lane.b32.xlu0 %v1484, 64
    %v1488 = vpop.permute.xlu0 %1487
    %v1490 = vmul.f32 %v1484, %v1488
    %1492 = vrot.lane.b32.xlu0 %v1490, 32
    %v1493 = vpop.permute.xlu0 %1492
    %v1495 = vadd.f32 %v1485, %v1493
    %v1496 = vtanh.pop %v1495
    %1498 = vrot.lane.b32.xlu0 %v1496, 64
    %v1499 = vpop.permute.xlu0 %1498
    %v1501 = vmul.f32 %v1484, %v1499
    %1503 = vrot.lane.b32.xlu0 %v1501, 32
    %v1504 = vpop.permute.xlu0 %1503
    %v1505 = vsel %vm293, %v1504, 0
    %1507 = vmatprep.subr.mxu0 0.0
    %1508 = vmatpush1.msra.mxu0 %v181
    %1509 = vmatprep.subr.mxu0 0.0
    %1510 = vmatpush1.msra.mxu0 %v182
    %1511 = vmatprep.subr.mxu0 0.0
    %1512 = vmatpush1.msra.mxu0 %v183
    %1513 = vmatprep.subr.mxu0 0.0
    %1514 = vmatpush1.msra.mxu0 %v184
    %1515 = vmatprep.subr.mxu0 0.0
    %1516 = vmatpush1.msra.mxu0 0.0
    %1517 = vmatprep.subr.mxu0 0.0
    %1518 = vmatpush1.msra.mxu0 0.0
    %1519 = vmatprep.subr.mxu0 0.0
    %1520 = vmatpush1.msra.mxu0 0.0
    %1521 = vmatprep.subr.mxu0 0.0
    %1522 = vmatpush1.msra.mxu0 0.0
    %1523 = vmatprep.subr.mxu0 0.0
    %1524 = vmatpush1.msra.mxu0 0.0
    %1525 = vmatprep.subr.mxu0 0.0
    %1526 = vmatpush1.msra.mxu0 0.0
    %1527 = vmatprep.subr.mxu0 0.0
    %1528 = vmatpush1.msra.mxu0 0.0
    %1529 = vmatprep.subr.mxu0 0.0
    %1530 = vmatpush1.msra.mxu0 0.0
    %1531 = vmatprep.subr.mxu0 0.0
    %1532 = vmatpush1.msra.mxu0 0.0
    %1533 = vmatprep.subr.mxu0 0.0
    %1534 = vmatpush1.msra.mxu0 0.0
    %1535 = vmatprep.subr.mxu0 0.0
    %1536 = vmatpush1.msra.mxu0 0.0
    %1537 = vmatprep.subr.mxu0 0.0
    %1538 = vmatpush1.msra.mxu0 0.0
    %1539 = vmatprep.subr.mxu0 0.0
    %1540 = vmatpush1.msra.mxu0 0.0
    %1541 = vmatprep.subr.mxu0 0.0
    %1542 = vmatpush1.msra.mxu0 0.0
    %1543 = vmatprep.subr.mxu0 0.0
    %1544 = vmatpush1.msra.mxu0 0.0
    %1545 = vmatprep.subr.mxu0 0.0
    %1546 = vmatpush1.msra.mxu0 0.0
    %1547 = vmatprep.subr.mxu0 0.0
    %1548 = vmatpush1.msra.mxu0 0.0
    %1549 = vmatprep.subr.mxu0 0.0
    %1550 = vmatpush1.msra.mxu0 0.0
    %1551 = vmatprep.subr.mxu0 0.0
    %1552 = vmatpush1.msra.mxu0 0.0
    %1553 = vmatprep.subr.mxu0 0.0
    %1554 = vmatpush1.msra.mxu0 0.0
    %1555 = vmatprep.subr.mxu0 0.0
    %1556 = vmatpush1.msra.mxu0 0.0
    %1557 = vmatprep.subr.mxu0 0.0
    %1558 = vmatpush1.msra.mxu0 0.0
    %1559 = vmatprep.subr.mxu0 0.0
    %1560 = vmatpush1.msra.mxu0 0.0
    %1561 = vmatprep.subr.mxu0 0.0
    %1562 = vmatpush1.msra.mxu0 0.0
    %1563 = vmatprep.subr.mxu0 0.0
    %1564 = vmatpush1.msra.mxu0 0.0
    %1565 = vmatprep.subr.mxu0 0.0
    %1566 = vmatpush1.msra.mxu0 0.0
    %1567 = vmatprep.subr.mxu0 0.0
    %1568 = vmatpush1.msra.mxu0 0.0
    %1569 = vmatprep.subr.mxu0 0.0
    %1570 = vmatpush1.msra.mxu0 0.0
    %1571 = vmatprep.mubr.f32.mxu0 0.0
    %1572 = vmatmul.mubr.f32.gmra.mrb[0].mxu0 %v1505
    %v1573 = vpop.f32.mrb[0].mxu0
    %v1574 = vadd.f32 %v185, %v1573
    %v1575 = vpop.f32.mrb[0].mxu0
    %1576 = vdwg.mxu0
    %v1577 = vsel %vm491, %v1574, -inf
    %1578 = vmax.xlane.f32.xlu0 %v1577
    %v1579 = vpop.xlane.xlu0 %1578
    %v1580 = vsub.f32 %v1574, %v1579
    %v1581 = vmul.f32 %v1580, 1.442695
    %v1582 = vpow.pop %v1581
    %v1583 = vsel %vm491, %v1582, 0.0
    %1584 = vadd.xlane.f32.xlu0 %v1583
    %v1585 = vpop.xlane.xlu0 %1584
    %v1586 = vlog2.pop %v1585
    %v1587 = vmul.f32 %v1586, 0.6931472
    %v1588 = vadd.f32 %v1587, %v1579
    %v1589 = vsub.f32 %v1574, %v1588
    %1590 = vst [vmem:[#allocation10 + $0x5] sm:$0x1] %v1589
    %1592 = vrot.lane.b32.xlu0 %v1479, 32
    %v1593 = vpop.permute.xlu0 %1592
    %1595 = vrot.lane.b32.xlu0 %v1501, 64
    %v1596 = vpop.permute.xlu0 %1595
    %v1598 = vsel %vm293, %v1593, %v1596
    %v1600 = vsel %vm193, %v1598, 0
    %1602 = vmatprep.subr.mxu0 %v165
    %1603 = vmatpush1.msra.mxu0 %v164
    %1604 = vmatprep.subr.mxu0 %v167
    %1605 = vmatpush1.msra.mxu0 %v166
    %1606 = vmatprep.subr.mxu0 %v169
    %1607 = vmatpush1.msra.mxu0 %v168
    %1608 = vmatprep.subr.mxu0 %v171
    %1609 = vmatpush1.msra.mxu0 %v170
    %1610 = vmatprep.subr.mxu0 %v173
    %1611 = vmatpush1.msra.mxu0 %v172
    %1612 = vmatprep.subr.mxu0 %v175
    %1613 = vmatpush1.msra.mxu0 %v174
    %1614 = vmatprep.subr.mxu0 %v177
    %1615 = vmatpush1.msra.mxu0 %v176
    %1616 = vmatprep.subr.mxu0 %v179
    %1617 = vmatpush1.msra.mxu0 %v178
    %1618 = vmatprep.subr.mxu0 0.0
    %1619 = vmatpush1.msra.mxu0 0.0
    %1620 = vmatprep.subr.mxu0 0.0
    %1621 = vmatpush1.msra.mxu0 0.0
    %1622 = vmatprep.subr.mxu0 0.0
    %1623 = vmatpush1.msra.mxu0 0.0
    %1624 = vmatprep.subr.mxu0 0.0
    %1625 = vmatpush1.msra.mxu0 0.0
    %1626 = vmatprep.subr.mxu0 0.0
    %1627 = vmatpush1.msra.mxu0 0.0
    %1628 = vmatprep.subr.mxu0 0.0
    %1629 = vmatpush1.msra.mxu0 0.0
    %1630 = vmatprep.subr.mxu0 0.0
    %1631 = vmatpush1.msra.mxu0 0.0
    %1632 = vmatprep.subr.mxu0 0.0
    %1633 = vmatpush1.msra.mxu0 0.0
    %1634 = vmatprep.subr.mxu0 0.0
    %1635 = vmatpush1.msra.mxu0 0.0
    %1636 = vmatprep.subr.mxu0 0.0
    %1637 = vmatpush1.msra.mxu0 0.0
    %1638 = vmatprep.subr.mxu0 0.0
    %1639 = vmatpush1.msra.mxu0 0.0
    %1640 = vmatprep.subr.mxu0 0.0
    %1641 = vmatpush1.msra.mxu0 0.0
    %1642 = vmatprep.subr.mxu0 0.0
    %1643 = vmatpush1.msra.mxu0 0.0
    %1644 = vmatprep.subr.mxu0 0.0
    %1645 = vmatpush1.msra.mxu0 0.0
    %1646 = vmatprep.subr.mxu0 0.0
    %1647 = vmatpush1.msra.mxu0 0.0
    %1648 = vmatprep.subr.mxu0 0.0
    %1649 = vmatpush1.msra.mxu0 0.0
    %1650 = vmatprep.subr.mxu0 0.0
    %1651 = vmatpush1.msra.mxu0 0.0
    %1652 = vmatprep.subr.mxu0 0.0
    %1653 = vmatpush1.msra.mxu0 0.0
    %1654 = vmatprep.subr.mxu0 0.0
    %1655 = vmatpush1.msra.mxu0 0.0
    %1656 = vmatprep.subr.mxu0 0.0
    %1657 = vmatpush1.msra.mxu0 0.0
    %1658 = vmatprep.subr.mxu0 0.0
    %1659 = vmatpush1.msra.mxu0 0.0
    %1660 = vmatprep.subr.mxu0 0.0
    %1661 = vmatpush1.msra.mxu0 0.0
    %1662 = vmatprep.subr.mxu0 0.0
    %1663 = vmatpush1.msra.mxu0 0.0
    %1664 = vmatprep.subr.mxu0 0.0
    %1665 = vmatpush1.msra.mxu0 0.0
    %1666 = vmatprep.mubr.f32.mxu0 0.0
    %1667 = vmatmul.mubr.f32.gmra.mrb[0].mxu0 %v1600
    %v1668 = vpop.f32.mrb[0].mxu0
    %v1669 = vadd.f32 0.0, %v1668
    %v1670 = vpop.f32.mrb[0].mxu0
    %v1671 = vadd.f32 0.0, %v1670
    %1672 = vdwg.mxu0
    %v1673 = vrot.slane %v161, 7
    %v1675 = vadd.f32 %v1669, %v1673
    %v1676 = vmul.f32 %v1675, %v191
    %v1677 = vtanh.pop %v1676
    %v1678 = vmul.f32 %v1677, %v191
    %v1679 = vadd.f32 %v1678, %v192
    %v1680 = vmul.f32 %v1679, %v1473
    %1682 = vrot.lane.b32.xlu0 %v1679, 64
    %v1683 = vpop.permute.xlu0 %1682
    %v1685 = vmul.f32 %v1679, %v1683
    %1687 = vrot.lane.b32.xlu0 %v1685, 32
    %v1688 = vpop.permute.xlu0 %1687
    %v1690 = vadd.f32 %v1680, %v1688
    %v1691 = vtanh.pop %v1690
    %1693 = vrot.lane.b32.xlu0 %v1691, 64
    %v1694 = vpop.permute.xlu0 %1693
    %v1696 = vmul.f32 %v1679, %v1694
    %v1697 = vadd.f32 %v1671, %v180
    %v1698 = vmul.f32 %v1697, %v191
    %v1699 = vtanh.pop %v1698
    %v1700 = vmul.f32 %v1699, %v191
    %v1701 = vadd.f32 %v1700, %v192
    %v1702 = vmul.f32 %v1701, %v1495
    %1704 = vrot.lane.b32.xlu0 %v1701, 64
    %v1705 = vpop.permute.xlu0 %1704
    %v1707 = vmul.f32 %v1701, %v1705
    %1709 = vrot.lane.b32.xlu0 %v1707, 32
    %v1710 = vpop.permute.xlu0 %1709
    %v1712 = vadd.f32 %v1702, %v1710
    %v1713 = vtanh.pop %v1712
    %1715 = vrot.lane.b32.xlu0 %v1713, 64
    %v1716 = vpop.permute.xlu0 %1715
    %v1718 = vmul.f32 %v1701, %v1716
    %1720 = vrot.lane.b32.xlu0 %v1718, 32
    %v1721 = vpop.permute.xlu0 %1720
    %v1722 = vsel %vm293, %v1721, 0
    %1724 = vmatprep.subr.mxu0 0.0
    %1725 = vmatpush1.msra.mxu0 %v181
    %1726 = vmatprep.subr.mxu0 0.0
    %1727 = vmatpush1.msra.mxu0 %v182
    %1728 = vmatprep.subr.mxu0 0.0
    %1729 = vmatpush1.msra.mxu0 %v183
    %1730 = vmatprep.subr.mxu0 0.0
    %1731 = vmatpush1.msra.mxu0 %v184
    %1732 = vmatprep.subr.mxu0 0.0
    %1733 = vmatpush1.msra.mxu0 0.0
    %1734 = vmatprep.subr.mxu0 0.0
    %1735 = vmatpush1.msra.mxu0 0.0
    %1736 = vmatprep.subr.mxu0 0.0
    %1737 = vmatpush1.msra.mxu0 0.0
    %1738 = vmatprep.subr.mxu0 0.0
    %1739 = vmatpush1.msra.mxu0 0.0
    %1740 = vmatprep.subr.mxu0 0.0
    %1741 = vmatpush1.msra.mxu0 0.0
    %1742 = vmatprep.subr.mxu0 0.0
    %1743 = vmatpush1.msra.mxu0 0.0
    %1744 = vmatprep.subr.mxu0 0.0
    %1745 = vmatpush1.msra.mxu0 0.0
    %1746 = vmatprep.subr.mxu0 0.0
    %1747 = vmatpush1.msra.mxu0 0.0
    %1748 = vmatprep.subr.mxu0 0.0
    %1749 = vmatpush1.msra.mxu0 0.0
    %1750 = vmatprep.subr.mxu0 0.0
    %1751 = vmatpush1.msra.mxu0 0.0
    %1752 = vmatprep.subr.mxu0 0.0
    %1753 = vmatpush1.msra.mxu0 0.0
    %1754 = vmatprep.subr.mxu0 0.0
    %1755 = vmatpush1.msra.mxu0 0.0
    %1756 = vmatprep.subr.mxu0 0.0
    %1757 = vmatpush1.msra.mxu0 0.0
    %1758 = vmatprep.subr.mxu0 0.0
    %1759 = vmatpush1.msra.mxu0 0.0
    %1760 = vmatprep.subr.mxu0 0.0
    %1761 = vmatpush1.msra.mxu0 0.0
    %1762 = vmatprep.subr.mxu0 0.0
    %1763 = vmatpush1.msra.mxu0 0.0
    %1764 = vmatprep.subr.mxu0 0.0
    %1765 = vmatpush1.msra.mxu0 0.0
    %1766 = vmatprep.subr.mxu0 0.0
    %1767 = vmatpush1.msra.mxu0 0.0
    %1768 = vmatprep.subr.mxu0 0.0
    %1769 = vmatpush1.msra.mxu0 0.0
    %1770 = vmatprep.subr.mxu0 0.0
    %1771 = vmatpush1.msra.mxu0 0.0
    %1772 = vmatprep.subr.mxu0 0.0
    %1773 = vmatpush1.msra.mxu0 0.0
    %1774 = vmatprep.subr.mxu0 0.0
    %1775 = vmatpush1.msra.mxu0 0.0
    %1776 = vmatprep.subr.mxu0 0.0
    %1777 = vmatpush1.msra.mxu0 0.0
    %1778 = vmatprep.subr.mxu0 0.0
    %1779 = vmatpush1.msra.mxu0 0.0
    %1780 = vmatprep.subr.mxu0 0.0
    %1781 = vmatpush1.msra.mxu0 0.0
    %1782 = vmatprep.subr.mxu0 0.0
    %1783 = vmatpush1.msra.mxu0 0.0
    %1784 = vmatprep.subr.mxu0 0.0
    %1785 = vmatpush1.msra.mxu0 0.0
    %1786 = vmatprep.subr.mxu0 0.0
    %1787 = vmatpush1.msra.mxu0 0.0
    %1788 = vmatprep.mubr.f32.mxu0 0.0
    %1789 = vmatmul.mubr.f32.gmra.mrb[0].mxu0 %v1722
    %v1790 = vpop.f32.mrb[0].mxu0
    %v1791 = vadd.f32 %v185, %v1790
    %v1792 = vpop.f32.mrb[0].mxu0
    %1793 = vdwg.mxu0
    %v1794 = vsel %vm491, %v1791, -inf
    %1795 = vmax.xlane.f32.xlu0 %v1794
    %v1796 = vpop.xlane.xlu0 %1795
    %v1797 = vsub.f32 %v1791, %v1796
    %v1798 = vmul.f32 %v1797, 1.442695
    %v1799 = vpow.pop %v1798
    %v1800 = vsel %vm491, %v1799, 0.0
    %1801 = vadd.xlane.f32.xlu0 %v1800
    %v1802 = vpop.xlane.xlu0 %1801
    %v1803 = vlog2.pop %v1802
    %v1804 = vmul.f32 %v1803, 0.6931472
    %v1805 = vadd.f32 %v1804, %v1796
    %v1806 = vsub.f32 %v1791, %v1805
    %1807 = vst [vmem:[#allocation10 + $0x6] sm:$0x1] %v1806
    %1809 = vrot.lane.b32.xlu0 %v1696, 32
    %v1810 = vpop.permute.xlu0 %1809
    %1812 = vrot.lane.b32.xlu0 %v1718, 64
    %v1813 = vpop.permute.xlu0 %1812
    %v1815 = vsel %vm293, %v1810, %v1813
    %v1817 = vsel %vm193, %v1815, 0
    %1819 = vmatprep.subr.mxu0 %v165
    %1820 = vmatpush1.msra.mxu0 %v164
    %1821 = vmatprep.subr.mxu0 %v167
    %1822 = vmatpush1.msra.mxu0 %v166
    %1823 = vmatprep.subr.mxu0 %v169
    %1824 = vmatpush1.msra.mxu0 %v168
    %1825 = vmatprep.subr.mxu0 %v171
    %1826 = vmatpush1.msra.mxu0 %v170
    %1827 = vmatprep.subr.mxu0 %v173
    %1828 = vmatpush1.msra.mxu0 %v172
    %1829 = vmatprep.subr.mxu0 %v175
    %1830 = vmatpush1.msra.mxu0 %v174
    %1831 = vmatprep.subr.mxu0 %v177
    %1832 = vmatpush1.msra.mxu0 %v176
    %1833 = vmatprep.subr.mxu0 %v179
    %1834 = vmatpush1.msra.mxu0 %v178
    %1835 = vmatprep.subr.mxu0 0.0
    %1836 = vmatpush1.msra.mxu0 0.0
    %1837 = vmatprep.subr.mxu0 0.0
    %1838 = vmatpush1.msra.mxu0 0.0
    %1839 = vmatprep.subr.mxu0 0.0
    %1840 = vmatpush1.msra.mxu0 0.0
    %1841 = vmatprep.subr.mxu0 0.0
    %1842 = vmatpush1.msra.mxu0 0.0
    %1843 = vmatprep.subr.mxu0 0.0
    %1844 = vmatpush1.msra.mxu0 0.0
    %1845 = vmatprep.subr.mxu0 0.0
    %1846 = vmatpush1.msra.mxu0 0.0
    %1847 = vmatprep.subr.mxu0 0.0
    %1848 = vmatpush1.msra.mxu0 0.0
    %1849 = vmatprep.subr.mxu0 0.0
    %1850 = vmatpush1.msra.mxu0 0.0
    %1851 = vmatprep.subr.mxu0 0.0
    %1852 = vmatpush1.msra.mxu0 0.0
    %1853 = vmatprep.subr.mxu0 0.0
    %1854 = vmatpush1.msra.mxu0 0.0
    %1855 = vmatprep.subr.mxu0 0.0
    %1856 = vmatpush1.msra.mxu0 0.0
    %1857 = vmatprep.subr.mxu0 0.0
    %1858 = vmatpush1.msra.mxu0 0.0
    %1859 = vmatprep.subr.mxu0 0.0
    %1860 = vmatpush1.msra.mxu0 0.0
    %1861 = vmatprep.subr.mxu0 0.0
    %1862 = vmatpush1.msra.mxu0 0.0
    %1863 = vmatprep.subr.mxu0 0.0
    %1864 = vmatpush1.msra.mxu0 0.0
    %1865 = vmatprep.subr.mxu0 0.0
    %1866 = vmatpush1.msra.mxu0 0.0
    %1867 = vmatprep.subr.mxu0 0.0
    %1868 = vmatpush1.msra.mxu0 0.0
    %1869 = vmatprep.subr.mxu0 0.0
    %1870 = vmatpush1.msra.mxu0 0.0
    %1871 = vmatprep.subr.mxu0 0.0
    %1872 = vmatpush1.msra.mxu0 0.0
    %1873 = vmatprep.subr.mxu0 0.0
    %1874 = vmatpush1.msra.mxu0 0.0
    %1875 = vmatprep.subr.mxu0 0.0
    %1876 = vmatpush1.msra.mxu0 0.0
    %1877 = vmatprep.subr.mxu0 0.0
    %1878 = vmatpush1.msra.mxu0 0.0
    %1879 = vmatprep.subr.mxu0 0.0
    %1880 = vmatpush1.msra.mxu0 0.0
    %1881 = vmatprep.subr.mxu0 0.0
    %1882 = vmatpush1.msra.mxu0 0.0
    %1883 = vmatprep.mubr.f32.mxu0 0.0
    %1884 = vmatmul.mubr.f32.gmra.mrb[0].mxu0 %v1817
    %v1885 = vpop.f32.mrb[0].mxu0
    %v1886 = vpop.f32.mrb[0].mxu0
    %v1887 = vadd.f32 0.0, %v1886
    %1888 = vdwg.mxu0
    %v1889 = vadd.f32 %v1887, %v180
    %v1890 = vmul.f32 %v1889, %v191
    %v1891 = vtanh.pop %v1890
    %v1892 = vmul.f32 %v1891, %v191
    %v1893 = vadd.f32 %v1892, %v192
    %v1894 = vmul.f32 %v1893, %v1712
    %1896 = vrot.lane.b32.xlu0 %v1893, 64
    %v1897 = vpop.permute.xlu0 %1896
    %v1899 = vmul.f32 %v1893, %v1897
    %1901 = vrot.lane.b32.xlu0 %v1899, 32
    %v1902 = vpop.permute.xlu0 %1901
    %v1904 = vadd.f32 %v1894, %v1902
    %v1905 = vtanh.pop %v1904
    %1907 = vrot.lane.b32.xlu0 %v1905, 64
    %v1908 = vpop.permute.xlu0 %1907
    %v1910 = vmul.f32 %v1893, %v1908
    %1912 = vrot.lane.b32.xlu0 %v1910, 32
    %v1913 = vpop.permute.xlu0 %1912
    %v1914 = vsel %vm293, %v1913, 0
    %1916 = vmatprep.subr.mxu0 0.0
    %1917 = vmatpush1.msra.mxu0 %v181
    %1918 = vmatprep.subr.mxu0 0.0
    %1919 = vmatpush1.msra.mxu0 %v182
    %1920 = vmatprep.subr.mxu0 0.0
    %1921 = vmatpush1.msra.mxu0 %v183
    %1922 = vmatprep.subr.mxu0 0.0
    %1923 = vmatpush1.msra.mxu0 %v184
    %1924 = vmatprep.subr.mxu0 0.0
    %1925 = vmatpush1.msra.mxu0 0.0
    %1926 = vmatprep.subr.mxu0 0.0
    %1927 = vmatpush1.msra.mxu0 0.0
    %1928 = vmatprep.subr.mxu0 0.0
    %1929 = vmatpush1.msra.mxu0 0.0
    %1930 = vmatprep.subr.mxu0 0.0
    %1931 = vmatpush1.msra.mxu0 0.0
    %1932 = vmatprep.subr.mxu0 0.0
    %1933 = vmatpush1.msra.mxu0 0.0
    %1934 = vmatprep.subr.mxu0 0.0
    %1935 = vmatpush1.msra.mxu0 0.0
    %1936 = vmatprep.subr.mxu0 0.0
    %1937 = vmatpush1.msra.mxu0 0.0
    %1938 = vmatprep.subr.mxu0 0.0
    %1939 = vmatpush1.msra.mxu0 0.0
    %1940 = vmatprep.subr.mxu0 0.0
    %1941 = vmatpush1.msra.mxu0 0.0
    %1942 = vmatprep.subr.mxu0 0.0
    %1943 = vmatpush1.msra.mxu0 0.0
    %1944 = vmatprep.subr.mxu0 0.0
    %1945 = vmatpush1.msra.mxu0 0.0
    %1946 = vmatprep.subr.mxu0 0.0
    %1947 = vmatpush1.msra.mxu0 0.0
    %1948 = vmatprep.subr.mxu0 0.0
    %1949 = vmatpush1.msra.mxu0 0.0
    %1950 = vmatprep.subr.mxu0 0.0
    %1951 = vmatpush1.msra.mxu0 0.0
    %1952 = vmatprep.subr.mxu0 0.0
    %1953 = vmatpush1.msra.mxu0 0.0
    %1954 = vmatprep.subr.mxu0 0.0
    %1955 = vmatpush1.msra.mxu0 0.0
    %1956 = vmatprep.subr.mxu0 0.0
    %1957 = vmatpush1.msra.mxu0 0.0
    %1958 = vmatprep.subr.mxu0 0.0
    %1959 = vmatpush1.msra.mxu0 0.0
    %1960 = vmatprep.subr.mxu0 0.0
    %1961 = vmatpush1.msra.mxu0 0.0
    %1962 = vmatprep.subr.mxu0 0.0
    %1963 = vmatpush1.msra.mxu0 0.0
    %1964 = vmatprep.subr.mxu0 0.0
    %1965 = vmatpush1.msra.mxu0 0.0
    %1966 = vmatprep.subr.mxu0 0.0
    %1967 = vmatpush1.msra.mxu0 0.0
    %1968 = vmatprep.subr.mxu0 0.0
    %1969 = vmatpush1.msra.mxu0 0.0
    %1970 = vmatprep.subr.mxu0 0.0
    %1971 = vmatpush1.msra.mxu0 0.0
    %1972 = vmatprep.subr.mxu0 0.0
    %1973 = vmatpush1.msra.mxu0 0.0
    %1974 = vmatprep.subr.mxu0 0.0
    %1975 = vmatpush1.msra.mxu0 0.0
    %1976 = vmatprep.subr.mxu0 0.0
    %1977 = vmatpush1.msra.mxu0 0.0
    %1978 = vmatprep.subr.mxu0 0.0
    %1979 = vmatpush1.msra.mxu0 0.0
    %1980 = vmatprep.mubr.f32.mxu0 0.0
    %1981 = vmatmul.mubr.f32.gmra.mrb[0].mxu0 %v1914
    %v1982 = vpop.f32.mrb[0].mxu0
    %v1983 = vadd.f32 %v185, %v1982
    %v1984 = vpop.f32.mrb[0].mxu0
    %1985 = vdwg.mxu0
    %v1986 = vsel %vm491, %v1983, -inf
    %1987 = vmax.xlane.f32.xlu0 %v1986
    %v1988 = vpop.xlane.xlu0 %1987
    %v1989 = vsub.f32 %v1983, %v1988
    %v1990 = vmul.f32 %v1989, 1.442695
    %v1991 = vpow.pop %v1990
    %v1992 = vsel %vm491, %v1991, 0.0
    %1993 = vadd.xlane.f32.xlu0 %v1992
    %v1994 = vpop.xlane.xlu0 %1993
    %v1995 = vlog2.pop %v1994
    %v1996 = vmul.f32 %v1995, 0.6931472
    %v1997 = vadd.f32 %v1996, %v1988
    %v1998 = vsub.f32 %v1983, %v1997
    %1999 = vst [vmem:[#allocation10 + $0x7] sm:$0x1] %v1998
    // Predicated region
    $region46: #{tpu_custom_call.1} parent=1 // pred_check
      _
    $region47: #{tpu_custom_call.1} parent=1 // pred_check_branch
      %2001 = sbr.rel (0) target = $region49
    $region48: #{tpu_custom_call.1} parent=1 // pred_region
      %s2003 = ssub.s32 128, 128
      %2004 = vsyncadd [#allocation4], %s2003
      %s2006 = sshll.u32 [#allocation10], 4
      %s2007 = int_to_ptr.vmem [resolvable:$true] %s2006
      %2009 = dma.vmem_to_hbm [thread:$0]  %s2007, 128, %s7, [#allocation4]
    $region49: #{tpu_custom_call.1} parent=1 // pred_fallthru
      _
    // Predicated region
    $region50: #{tpu_custom_call.1} parent=1 // pred_check
      _
    $region51: #{tpu_custom_call.1} parent=1 // pred_check_branch
      %2011 = sbr.rel (0) target = $region53
    $region52: #{tpu_custom_call.1} parent=1 // pred_region
      %2012 = dma.done [#allocation4], 128
    $region53: #{tpu_custom_call.1} parent=1 // pred_fallthru
      _
    %2013 = vsyncpa [#allocation3], 1
    %2014 = vsyncpa [#allocation6], 1
    %2015 = vsyncpa [#allocation9], 1
    %2016 = vsyncpa [#allocation4], 1

</llo_original>
